<compile_context>
chip_gen: v5e
topology: v5e:2x2
jax: 0.10.0
libtpu: 0.0.40
codegen_flags: <defaults>
</compile_context>

<pallas_src>
import functools
import math

import jax
import jax.numpy as jnp
from jax import lax
from jax.experimental import pallas as pl
from jax.experimental.pallas import tpu as pltpu


# -----------------------------------------------------------------------------
# VMEM budget helpers
# -----------------------------------------------------------------------------
def _vmem_limit_bytes():
    """Pick a scoped-VMEM limit that is safe on v5e/v6e (128 MiB) and v7x (64 MiB/TC)."""
    try:
        info = pltpu.get_tpu_info()
        cap = int(getattr(info, "vmem_capacity_bytes", 64 * 1024 * 1024))
    except Exception:
        cap = 64 * 1024 * 1024  # conservative: v7x per-TensorCore VMEM
    # <= ~56 MiB on v7x, <= 100 MiB on 128-MiB parts.
    return min((cap * 7) // 8, 100 * 1024 * 1024)


def _kernel2_vmem_estimate(HW, Cp, tq, tk, kv_resident):
    """Rough VMEM footprint of the flash kernel (double-buffered operands)."""
    bf16, f32 = 2, 4
    dbuf = 2
    kv_rows = HW if kv_resident else tk
    total = 0
    total += dbuf * 2 * kv_rows * Cp * bf16        # K and V blocks
    total += dbuf * tq * Cp * f32                  # residual x
    total += dbuf * tq * Cp * bf16                 # q
    total += dbuf * Cp * Cp * bf16                 # wp
    total += dbuf * 128 * f32                      # bp (lane padded)
    total += dbuf * tq * Cp * f32                  # output tile
    total += 2 * tq * 128 * f32 + tq * Cp * f32    # m, l, acc scratch
    total += tq * tk * f32 * 2                     # logits / p temporaries
    return total


# -----------------------------------------------------------------------------
# Kernel 1: GroupNorm affine + QKV projections (one tile of HW rows).
# -----------------------------------------------------------------------------
def qkv_proj_kernel(x_ref, a_ref, s_ref,
                    wq_ref, wk_ref, wv_ref,
                    bq_ref, bk_ref, bv_ref,
                    q_ref, k_ref, v_ref):
    # GroupNorm (stats pre-folded into a per-(batch, channel) scale/shift).
    h = (x_ref[0] * a_ref[0] + s_ref[0]).astype(jnp.bfloat16)       # (tp, Cp)
    # Three independent matmuls; bias-add + bf16 cast fused per output.
    # No (tp, 3Cp) f32 temporary and no slice copies.
    q_ref[0] = (jnp.dot(h, wq_ref[...], preferred_element_type=jnp.float32)
                + bq_ref[...]).astype(jnp.bfloat16)
    k_ref[0] = (jnp.dot(h, wk_ref[...], preferred_element_type=jnp.float32)
                + bk_ref[...]).astype(jnp.bfloat16)
    v_ref[0] = (jnp.dot(h, wv_ref[...], preferred_element_type=jnp.float32)
                + bv_ref[...]).astype(jnp.bfloat16)


# -----------------------------------------------------------------------------
# Kernel 2: flash attention (online softmax) + proj_out + residual add.
#   kv_resident=True : k_ref/v_ref hold the whole (HW, Cp) K/V for this batch
#                      element (DMA'd once per batch); slice the kv tile here.
#   kv_resident=False: k_ref/v_ref already hold the (tk, Cp) tile (per-step DMA).
# -----------------------------------------------------------------------------
def flash_attn_kernel(x_ref, q_ref, k_ref, v_ref, wp_ref, bp_ref, o_ref,
                      m_s, l_s, acc_s, *, tk, kv_resident):
    ki = pl.program_id(2)
    nk = pl.num_programs(2)

    @pl.when(ki == 0)
    def _init():
        m_s[...] = jnp.full(m_s.shape, -jnp.inf, dtype=m_s.dtype)
        l_s[...] = jnp.zeros(l_s.shape, dtype=l_s.dtype)
        acc_s[...] = jnp.zeros(acc_s.shape, dtype=acc_s.dtype)

    q = q_ref[0]                                   # (tq, Cp) bf16, scale folded
    if kv_resident:
        start = pl.multiple_of(ki * tk, tk)
        k = k_ref[0, pl.ds(start, tk), :]          # (tk, Cp) bf16
        v = v_ref[0, pl.ds(start, tk), :]
    else:
        k = k_ref[0]
        v = v_ref[0]

    # logits: contract channel axis directly (no transpose of k).
    logits = lax.dot_general(q, k, (((1,), (1,)), ((), ())),
                             preferred_element_type=jnp.float32)    # (tq, tk)

    m_prev = m_s[...]
    m_new = jnp.maximum(m_prev, jnp.max(logits, axis=-1, keepdims=True))
    alpha = jnp.exp(m_prev - m_new)
    p = jnp.exp(logits - m_new)                                     # f32
    l_s[...] = alpha * l_s[...] + jnp.sum(p, axis=-1, keepdims=True)
    acc_s[...] = alpha * acc_s[...] + jnp.dot(
        p.astype(jnp.bfloat16), v, preferred_element_type=jnp.float32)
    m_s[...] = m_new

    @pl.when(ki == nk - 1)
    def _finalize():
        attn = acc_s[...] * pl.reciprocal(l_s[...], approx=True)    # (tq, Cp)
        proj = jnp.dot(attn.astype(jnp.bfloat16), wp_ref[...],
                       preferred_element_type=jnp.float32) + bp_ref[...]
        o_ref[0] = x_ref[0] + proj


# -----------------------------------------------------------------------------
# Tile selection
# -----------------------------------------------------------------------------
_TILE_CANDIDATES = (1024, 512, 256, 128, 64, 32, 16, 8)


def _pick_tile(n, candidates=_TILE_CANDIDATES, min_count=1):
    """Largest candidate divisor of n giving at least `min_count` tiles;
    otherwise the largest divisor; otherwise (prime-ish n) the full extent."""
    fallback = None
    for t in candidates:
        if n % t == 0:
            if fallback is None:
                fallback = t
            if n // t >= min_count:
                return t
    if fallback is not None:
        return fallback
    assert n <= 1024, (
        f"spatial size {n} has no tile divisor in {candidates}; "
        "pad H*W to a multiple of 8 before calling attn_block_pallas")
    return n


# -----------------------------------------------------------------------------
# Wrapper: NCHW in / NCHW out, parameters in torch Conv2d convention.
# -----------------------------------------------------------------------------
def attn_block_pallas(x_nchw, params, num_groups=32, eps=1e-6,
                      force_kv_resident=None):
    B, C, H, W = x_nchw.shape
    HW = H * W
    assert C % num_groups == 0
    cg = C // num_groups

    vmem_limit = _vmem_limit_bytes()
    xf = x_nchw.astype(jnp.float32)

    # --- GroupNorm statistics straight from the NCHW layout (no pass over the
    #     transposed copy), folded into a per-(batch, channel) affine. ---
    xg = xf.reshape(B, num_groups, cg * HW)
    mean_g = jnp.mean(xg, axis=-1)                                   # (B, G)
    var_g = jnp.mean(jnp.square(xg - mean_g[..., None]), axis=-1)
    rstd_g = lax.rsqrt(var_g + eps)
    mean_c = jnp.repeat(mean_g, cg, axis=1)                          # (B, C)
    rstd_c = jnp.repeat(rstd_g, cg, axis=1)
    gamma = params["gamma"].reshape(C).astype(jnp.float32)
    beta = params["beta"].reshape(C).astype(jnp.float32)
    a_c = gamma[None, :] * rstd_c                                    # (B, C)
    s_c = beta[None, :] - mean_c * a_c                               # (B, C)

    # --- (B, C, H, W) -> (B, HW, C): channels on lanes, spatial on sublanes ---
    x = jnp.transpose(xf, (0, 2, 3, 1)).reshape(B, HW, C)

    # --- lane-dense channel padding (skipped when already aligned) ---
    Cp = max(128, ((C + 127) // 128) * 128)
    pad = Cp - C
    if pad:
        xp = jnp.pad(x, ((0, 0), (0, 0), (0, pad)))
        a_c = jnp.pad(a_c, ((0, 0), (0, pad)))
        s_c = jnp.pad(s_c, ((0, 0), (0, pad)))
    else:
        xp = x
    a3 = a_c.reshape(B, 1, Cp)
    s3 = s_c.reshape(B, 1, Cp)

    # --- weights: torch (out,in,1,1) -> (in,out); softmax scale folded into q ---
    def w2d(w):
        wt = jnp.asarray(w, jnp.float32).reshape(C, C).T
        return jnp.pad(wt, ((0, pad), (0, pad))) if pad else wt

    def b2d(b):
        bb = jnp.asarray(b, jnp.float32).reshape(1, C)
        return jnp.pad(bb, ((0, 0), (0, pad))) if pad else bb

    scale = float(C) ** (-0.5)
    wq_p = (w2d(params["wq"]) * scale).astype(jnp.bfloat16)
    wk_p = w2d(params["wk"]).astype(jnp.bfloat16)
    wv_p = w2d(params["wv"]).astype(jnp.bfloat16)
    wp_p = w2d(params["wp"]).astype(jnp.bfloat16)
    bq_p = b2d(params["bq"]) * scale
    bk_p = b2d(params["bk"])
    bv_p = b2d(params["bv"])
    bp_p = b2d(params["bp"])

    # --- tile selection: big q/proj tiles, but keep >=4 parallel tiles for the
    #     two v7x TensorCores; tk capped at 256 (f32 logits tile / v5e store). ---
    min_tiles = max(1, math.ceil(4 / B))
    tp = _pick_tile(HW, min_count=min_tiles)
    tq = _pick_tile(HW, min_count=min_tiles)
    tk = _pick_tile(HW, candidates=(256, 128, 64, 32, 16, 8))

    # --- K/V residency decision (VMEM-gated for v7x's 64 MiB per TC) ---
    kv_resident = force_kv_resident
    if kv_resident is None:
        kv_resident = (_kernel2_vmem_estimate(HW, Cp, tq, tk, True)
                       <= int(vmem_limit * 0.9))

    # ---------------- kernel 1: GroupNorm affine + QKV projections ----------------
    q, k, v = pl.pallas_call(
        qkv_proj_kernel,
        out_shape=[jax.ShapeDtypeStruct((B, HW, Cp), jnp.bfloat16)] * 3,
        grid_spec=pltpu.PrefetchScalarGridSpec(
            num_scalar_prefetch=0,
            grid=(B, HW // tp),
            in_specs=[
                pl.BlockSpec((1, tp, Cp), lambda b, i: (b, i, 0)),   # x
                pl.BlockSpec((1, 1, Cp), lambda b, i: (b, 0, 0)),    # GN scale
                pl.BlockSpec((1, 1, Cp), lambda b, i: (b, 0, 0)),    # GN shift
                pl.BlockSpec((Cp, Cp), lambda b, i: (0, 0)),         # wq
                pl.BlockSpec((Cp, Cp), lambda b, i: (0, 0)),         # wk
                pl.BlockSpec((Cp, Cp), lambda b, i: (0, 0)),         # wv
                pl.BlockSpec((1, Cp), lambda b, i: (0, 0)),          # bq
                pl.BlockSpec((1, Cp), lambda b, i: (0, 0)),          # bk
                pl.BlockSpec((1, Cp), lambda b, i: (0, 0)),          # bv
            ],
            out_specs=[pl.BlockSpec((1, tp, Cp), lambda b, i: (b, i, 0))] * 3,
        ),
        compiler_params=pltpu.CompilerParams(
            dimension_semantics=("parallel", "parallel"),
            vmem_limit_bytes=vmem_limit),
    )(xp, a3, s3, wq_p, wk_p, wv_p, bq_p, bk_p, bv_p)

    # ---------------- kernel 2: flash attention + proj_out + residual ----------------
    if kv_resident:
        k_spec = pl.BlockSpec((1, HW, Cp), lambda b, qi, ki: (b, 0, 0))
        v_spec = pl.BlockSpec((1, HW, Cp), lambda b, qi, ki: (b, 0, 0))
    else:
        k_spec = pl.BlockSpec((1, tk, Cp), lambda b, qi, ki: (b, ki, 0))
        v_spec = pl.BlockSpec((1, tk, Cp), lambda b, qi, ki: (b, ki, 0))

    flash = functools.partial(flash_attn_kernel, tk=tk, kv_resident=kv_resident)

    out = pl.pallas_call(
        flash,
        out_shape=jax.ShapeDtypeStruct((B, HW, Cp), jnp.float32),
        grid_spec=pltpu.PrefetchScalarGridSpec(
            num_scalar_prefetch=0,
            grid=(B, HW // tq, HW // tk),
            in_specs=[
                pl.BlockSpec((1, tq, Cp), lambda b, qi, ki: (b, qi, 0)),  # residual x
                pl.BlockSpec((1, tq, Cp), lambda b, qi, ki: (b, qi, 0)),  # q
                k_spec,                                                   # k
                v_spec,                                                   # v
                pl.BlockSpec((Cp, Cp), lambda b, qi, ki: (0, 0)),         # wp
                pl.BlockSpec((1, Cp), lambda b, qi, ki: (0, 0)),          # bp
            ],
            out_specs=pl.BlockSpec((1, tq, Cp), lambda b, qi, ki: (b, qi, 0)),
            scratch_shapes=[
                pltpu.VMEM((tq, 1), jnp.float32),    # m (running max)
                pltpu.VMEM((tq, 1), jnp.float32),    # l (running denom)
                pltpu.VMEM((tq, Cp), jnp.float32),   # acc
            ],
        ),
        compiler_params=pltpu.CompilerParams(
            dimension_semantics=("parallel", "parallel", "arbitrary"),
            vmem_limit_bytes=vmem_limit),
    )(xp, q, k, v, wp_p, bp_p)

    if pad:
        out = out[:, :, :C]
    return jnp.transpose(out.reshape(B, H, W, C), (0, 3, 1, 2))


# -----------------------------------------------------------------------------
# Pure-JAX reference (mirrors the PyTorch forward) for correctness check.
# -----------------------------------------------------------------------------
def attn_block_ref(x_nchw, params, num_groups=32, eps=1e-6):
    B, C, H, W = x_nchw.shape
    HW = H * W

    xg = x_nchw.reshape(B, num_groups, (C // num_groups) * HW)
    mean = jnp.mean(xg, axis=-1, keepdims=True)
    var = jnp.mean((xg - mean) ** 2, axis=-1, keepdims=True)
    hn = ((xg - mean) / jnp.sqrt(var + eps)).reshape(B, C, H, W)
    hn = hn * params["gamma"].reshape(1, C, 1, 1) + params["beta"].reshape(1, C, 1, 1)

    def conv1x1(h, w, b):
        return jnp.einsum("bchw,oc->bohw", h, w) + b.reshape(1, C, 1, 1)

    q = conv1x1(hn, params["wq"].reshape(C, C), params["bq"])
    k = conv1x1(hn, params["wk"].reshape(C, C), params["bk"])
    v = conv1x1(hn, params["wv"].reshape(C, C), params["bv"])

    q = q.reshape(B, C, HW).transpose(0, 2, 1)
    k = k.reshape(B, C, HW)
    w_ = jnp.einsum("bic,bcj->bij", q, k) * (float(C) ** -0.5)
    w_ = jax.nn.softmax(w_, axis=2)
    v = v.reshape(B, C, HW)
    h_ = jnp.einsum("bcj,bij->bci", v, w_).reshape(B, C, H, W)
    h_ = conv1x1(h_, params["wp"].reshape(C, C), params["bp"])
    return x_nchw + h_


def _make_params(key, C):
    keys = jax.random.split(key, 10)
    return {
        "gamma": 1.0 + 0.1 * jax.random.normal(keys[0], (C,), jnp.float32),
        "beta": 0.1 * jax.random.normal(keys[1], (C,), jnp.float32),
        "wq": 0.05 * jax.random.normal(keys[2], (C, C, 1, 1), jnp.float32),
        "bq": 0.05 * jax.random.normal(keys[3], (C,), jnp.float32),
        "wk": 0.05 * jax.random.normal(keys[4], (C, C, 1, 1), jnp.float32),
        "bk": 0.05 * jax.random.normal(keys[5], (C,), jnp.float32),
        "wv": 0.05 * jax.random.normal(keys[6], (C, C, 1, 1), jnp.float32),
        "bv": 0.05 * jax.random.normal(keys[7], (C,), jnp.float32),
        "wp": 0.05 * jax.random.normal(keys[8], (C, C, 1, 1), jnp.float32),
        "bp": 0.05 * jax.random.normal(keys[9], (C,), jnp.float32),
    }


# -----------------------------------------------------------------------------
if __name__ == "__main__":
    key = jax.random.PRNGKey(0)
    k1, k2, k3, k4 = jax.random.split(key, 4)

    # Test 1: lane-aligned channels, resident-K/V path, multiple kv steps
    # (exercises the online softmax and the in-kernel pl.ds slicing).
    B, C, H, W = 2, 128, 32, 32
    params = _make_params(k1, C)
    x = jax.random.normal(k2, (B, C, H, W), jnp.float32)
    out = jax.block_until_ready(attn_block_pallas(x, params))
    ref = attn_block_ref(x, params)
    assert out.shape == ref.shape == (B, C, H, W)
    err = float(jnp.max(jnp.abs(out - ref)))
    assert err < 1e-2, f"test1 max abs error {err}"

    # Test 2: C not a multiple of 128 (channel padding), B=1, and the tiled
    # (non-resident) K/V fallback path forced on.
    B2, C2, H2, W2 = 1, 64, 32, 32
    params2 = _make_params(k3, C2)
    x2 = jax.random.normal(k4, (B2, C2, H2, W2), jnp.float32)
    out2 = jax.block_until_ready(
        attn_block_pallas(x2, params2, force_kv_resident=False))
    ref2 = attn_block_ref(x2, params2)
    err2 = float(jnp.max(jnp.abs(out2 - ref2)))
    assert err2 < 1e-2, f"test2 max abs error {err2}"

    print("KERNEL_OK")
</pallas_src>

<mosaic_0001>
module attributes {stable_mosaic.version = 11 : i64} {
  func.func @qkv_proj_kernel(%arg0: i32, %arg1: i32, %arg2: memref<1x512x128xf32, #tpu.memory_space<vmem>>, %arg3: memref<1x1x128xf32, #tpu.memory_space<vmem>>, %arg4: memref<1x1x128xf32, #tpu.memory_space<vmem>>, %arg5: memref<128x128xbf16, #tpu.memory_space<vmem>>, %arg6: memref<128x128xbf16, #tpu.memory_space<vmem>>, %arg7: memref<128x128xbf16, #tpu.memory_space<vmem>>, %arg8: memref<1x128xf32, #tpu.memory_space<vmem>>, %arg9: memref<1x128xf32, #tpu.memory_space<vmem>>, %arg10: memref<1x128xf32, #tpu.memory_space<vmem>>, %arg11: memref<1x512x128xbf16, #tpu.memory_space<vmem>>, %arg12: memref<1x512x128xbf16, #tpu.memory_space<vmem>>, %arg13: memref<1x512x128xbf16, #tpu.memory_space<vmem>>) attributes {dimension_semantics = [#tpu.dimension_semantics<parallel>, #tpu.dimension_semantics<parallel>], iteration_bounds = array<i64: 2, 2>, scalar_prefetch = 0 : i64, scratch_operands = 0 : i64, tpu.core_type = #tpu.core_type<tc>, window_params = [{transform_indices = @transform_0, window_bounds = array<i64: 1, 512, 128>}, {transform_indices = @transform_1, window_bounds = array<i64: 1, 1, 128>}, {transform_indices = @transform_2, window_bounds = array<i64: 1, 1, 128>}, {pipeline_mode = #tpu.pipeline_mode<synchronous>, transform_indices = @transform_3, window_bounds = array<i64: 128, 128>}, {pipeline_mode = #tpu.pipeline_mode<synchronous>, transform_indices = @transform_4, window_bounds = array<i64: 128, 128>}, {pipeline_mode = #tpu.pipeline_mode<synchronous>, transform_indices = @transform_5, window_bounds = array<i64: 128, 128>}, {pipeline_mode = #tpu.pipeline_mode<synchronous>, transform_indices = @transform_6, window_bounds = array<i64: 1, 128>}, {pipeline_mode = #tpu.pipeline_mode<synchronous>, transform_indices = @transform_7, window_bounds = array<i64: 1, 128>}, {pipeline_mode = #tpu.pipeline_mode<synchronous>, transform_indices = @transform_8, window_bounds = array<i64: 1, 128>}, {transform_indices = @transform_9, window_bounds = array<i64: 1, 512, 128>}, {transform_indices = @transform_10, window_bounds = array<i64: 1, 512, 128>}, {transform_indices = @transform_11, window_bounds = array<i64: 1, 512, 128>}]} {
    %c0 = arith.constant 0 : index
    %c0_0 = arith.constant 0 : index
    %c0_1 = arith.constant 0 : index
    %0 = vector.load %arg2[%c0, %c0_0, %c0_1] : memref<1x512x128xf32, #tpu.memory_space<vmem>>, vector<1x512x128xf32>
    %1 = vector.shape_cast %0 : vector<1x512x128xf32> to vector<512x128xf32>
    %c0_2 = arith.constant 0 : index
    %c0_3 = arith.constant 0 : index
    %c0_4 = arith.constant 0 : index
    %2 = vector.load %arg3[%c0_2, %c0_3, %c0_4] : memref<1x1x128xf32, #tpu.memory_space<vmem>>, vector<1x1x128xf32>
    %3 = vector.shape_cast %2 : vector<1x1x128xf32> to vector<1x128xf32>
    %4 = vector.broadcast %3 : vector<1x128xf32> to vector<512x128xf32>
    %5 = arith.mulf %1, %4 : vector<512x128xf32>
    %c0_5 = arith.constant 0 : index
    %c0_6 = arith.constant 0 : index
    %c0_7 = arith.constant 0 : index
    %6 = vector.load %arg4[%c0_5, %c0_6, %c0_7] : memref<1x1x128xf32, #tpu.memory_space<vmem>>, vector<1x1x128xf32>
    %7 = vector.shape_cast %6 : vector<1x1x128xf32> to vector<1x128xf32>
    %8 = vector.broadcast %7 : vector<1x128xf32> to vector<512x128xf32>
    %9 = arith.addf %5, %8 : vector<512x128xf32>
    %10 = arith.truncf %9 : vector<512x128xf32> to vector<512x128xbf16>
    %c0_8 = arith.constant 0 : index
    %c0_9 = arith.constant 0 : index
    %11 = vector.load %arg5[%c0_8, %c0_9] : memref<128x128xbf16, #tpu.memory_space<vmem>>, vector<128x128xbf16>
    %cst = arith.constant dense<0.000000e+00> : vector<512x128xf32>
    %12 = tpu.matmul %10, %11, %cst {dimension_numbers = #tpu.dot_dimension_numbers<[1], [0], [0], [1], [0, 0, 1, 1], [], []>} : vector<512x128xbf16>, vector<128x128xbf16>, vector<512x128xf32> -> vector<512x128xf32>
    %c0_10 = arith.constant 0 : index
    %c0_11 = arith.constant 0 : index
    %13 = vector.load %arg8[%c0_10, %c0_11] : memref<1x128xf32, #tpu.memory_space<vmem>>, vector<1x128xf32>
    %14 = vector.broadcast %13 : vector<1x128xf32> to vector<512x128xf32>
    %15 = arith.addf %12, %14 : vector<512x128xf32>
    %16 = arith.truncf %15 : vector<512x128xf32> to vector<512x128xbf16>
    %c0_12 = arith.constant 0 : index
    %c0_13 = arith.constant 0 : index
    %c0_14 = arith.constant 0 : index
    %17 = vector.load %arg11[%c0_12, %c0_13, %c0_14] : memref<1x512x128xbf16, #tpu.memory_space<vmem>>, vector<1x512x128xbf16>
    %18 = vector.shape_cast %17 : vector<1x512x128xbf16> to vector<512x128xbf16>
    %19 = vector.shape_cast %16 : vector<512x128xbf16> to vector<1x512x128xbf16>
    tpu.vector_store %arg11[%c0_12, %c0_13, %c0_14], %19 {strides = array<i32>} : memref<1x512x128xbf16, #tpu.memory_space<vmem>>, vector<1x512x128xbf16>,
    %c0_15 = arith.constant 0 : index
    %c0_16 = arith.constant 0 : index
    %20 = vector.load %arg6[%c0_15, %c0_16] : memref<128x128xbf16, #tpu.memory_space<vmem>>, vector<128x128xbf16>
    %cst_17 = arith.constant dense<0.000000e+00> : vector<512x128xf32>
    %21 = tpu.matmul %10, %20, %cst_17 {dimension_numbers = #tpu.dot_dimension_numbers<[1], [0], [0], [1], [0, 0, 1, 1], [], []>} : vector<512x128xbf16>, vector<128x128xbf16>, vector<512x128xf32> -> vector<512x128xf32>
    %c0_18 = arith.constant 0 : index
    %c0_19 = arith.constant 0 : index
    %22 = vector.load %arg9[%c0_18, %c0_19] : memref<1x128xf32, #tpu.memory_space<vmem>>, vector<1x128xf32>
    %23 = vector.broadcast %22 : vector<1x128xf32> to vector<512x128xf32>
    %24 = arith.addf %21, %23 : vector<512x128xf32>
    %25 = arith.truncf %24 : vector<512x128xf32> to vector<512x128xbf16>
    %c0_20 = arith.constant 0 : index
    %c0_21 = arith.constant 0 : index
    %c0_22 = arith.constant 0 : index
    %26 = vector.load %arg12[%c0_20, %c0_21, %c0_22] : memref<1x512x128xbf16, #tpu.memory_space<vmem>>, vector<1x512x128xbf16>
    %27 = vector.shape_cast %26 : vector<1x512x128xbf16> to vector<512x128xbf16>
    %28 = vector.shape_cast %25 : vector<512x128xbf16> to vector<1x512x128xbf16>
    tpu.vector_store %arg12[%c0_20, %c0_21, %c0_22], %28 {strides = array<i32>} : memref<1x512x128xbf16, #tpu.memory_space<vmem>>, vector<1x512x128xbf16>,
    %c0_23 = arith.constant 0 : index
    %c0_24 = arith.constant 0 : index
    %29 = vector.load %arg7[%c0_23, %c0_24] : memref<128x128xbf16, #tpu.memory_space<vmem>>, vector<128x128xbf16>
    %cst_25 = arith.constant dense<0.000000e+00> : vector<512x128xf32>
    %30 = tpu.matmul %10, %29, %cst_25 {dimension_numbers = #tpu.dot_dimension_numbers<[1], [0], [0], [1], [0, 0, 1, 1], [], []>} : vector<512x128xbf16>, vector<128x128xbf16>, vector<512x128xf32> -> vector<512x128xf32>
    %c0_26 = arith.constant 0 : index
    %c0_27 = arith.constant 0 : index
    %31 = vector.load %arg10[%c0_26, %c0_27] : memref<1x128xf32, #tpu.memory_space<vmem>>, vector<1x128xf32>
    %32 = vector.broadcast %31 : vector<1x128xf32> to vector<512x128xf32>
    %33 = arith.addf %30, %32 : vector<512x128xf32>
    %34 = arith.truncf %33 : vector<512x128xf32> to vector<512x128xbf16>
    %c0_28 = arith.constant 0 : index
    %c0_29 = arith.constant 0 : index
    %c0_30 = arith.constant 0 : index
    %35 = vector.load %arg13[%c0_28, %c0_29, %c0_30] : memref<1x512x128xbf16, #tpu.memory_space<vmem>>, vector<1x512x128xbf16>
    %36 = vector.shape_cast %35 : vector<1x512x128xbf16> to vector<512x128xbf16>
    %37 = vector.shape_cast %34 : vector<512x128xbf16> to vector<1x512x128xbf16>
    tpu.vector_store %arg13[%c0_28, %c0_29, %c0_30], %37 {strides = array<i32>} : memref<1x512x128xbf16, #tpu.memory_space<vmem>>, vector<1x512x128xbf16>,
    return
  }
  func.func @transform_0(%arg0: i32, %arg1: i32) -> (i32, i32, i32) {
    %c0_i32 = arith.constant 0 : i32
    %c0_i32_0 = arith.constant 0 : i32
    return %arg0, %arg1, %c0_i32 : i32, i32, i32
  }
  func.func @transform_1(%arg0: i32, %arg1: i32) -> (i32, i32, i32) {
    %c0_i32 = arith.constant 0 : i32
    %c0_i32_0 = arith.constant 0 : i32
    %c0_i32_1 = arith.constant 0 : i32
    return %arg0, %c0_i32, %c0_i32_0 : i32, i32, i32
  }
  func.func @transform_2(%arg0: i32, %arg1: i32) -> (i32, i32, i32) {
    %c0_i32 = arith.constant 0 : i32
    %c0_i32_0 = arith.constant 0 : i32
    %c0_i32_1 = arith.constant 0 : i32
    return %arg0, %c0_i32, %c0_i32_0 : i32, i32, i32
  }
  func.func @transform_3(%arg0: i32, %arg1: i32) -> (i32, i32) {
    %c0_i32 = arith.constant 0 : i32
    %c0_i32_0 = arith.constant 0 : i32
    %c0_i32_1 = arith.constant 0 : i32
    return %c0_i32, %c0_i32_0 : i32, i32
  }
  func.func @transform_4(%arg0: i32, %arg1: i32) -> (i32, i32) {
    %c0_i32 = arith.constant 0 : i32
    %c0_i32_0 = arith.constant 0 : i32
    %c0_i32_1 = arith.constant 0 : i32
    return %c0_i32, %c0_i32_0 : i32, i32
  }
  func.func @transform_5(%arg0: i32, %arg1: i32) -> (i32, i32) {
    %c0_i32 = arith.constant 0 : i32
    %c0_i32_0 = arith.constant 0 : i32
    %c0_i32_1 = arith.constant 0 : i32
    return %c0_i32, %c0_i32_0 : i32, i32
  }
  func.func @transform_6(%arg0: i32, %arg1: i32) -> (i32, i32) {
    %c0_i32 = arith.constant 0 : i32
    %c0_i32_0 = arith.constant 0 : i32
    %c0_i32_1 = arith.constant 0 : i32
    return %c0_i32, %c0_i32_0 : i32, i32
  }
  func.func @transform_7(%arg0: i32, %arg1: i32) -> (i32, i32) {
    %c0_i32 = arith.constant 0 : i32
    %c0_i32_0 = arith.constant 0 : i32
    %c0_i32_1 = arith.constant 0 : i32
    return %c0_i32, %c0_i32_0 : i32, i32
  }
  func.func @transform_8(%arg0: i32, %arg1: i32) -> (i32, i32) {
    %c0_i32 = arith.constant 0 : i32
    %c0_i32_0 = arith.constant 0 : i32
    %c0_i32_1 = arith.constant 0 : i32
    return %c0_i32, %c0_i32_0 : i32, i32
  }
  func.func @transform_9(%arg0: i32, %arg1: i32) -> (i32, i32, i32) {
    %c0_i32 = arith.constant 0 : i32
    %c0_i32_0 = arith.constant 0 : i32
    return %arg0, %arg1, %c0_i32 : i32, i32, i32
  }
  func.func @transform_10(%arg0: i32, %arg1: i32) -> (i32, i32, i32) {
    %c0_i32 = arith.constant 0 : i32
    %c0_i32_0 = arith.constant 0 : i32
    return %arg0, %arg1, %c0_i32 : i32, i32, i32
  }
  func.func @transform_11(%arg0: i32, %arg1: i32) -> (i32, i32, i32) {
    %c0_i32 = arith.constant 0 : i32
    %c0_i32_0 = arith.constant 0 : i32
    return %arg0, %arg1, %c0_i32 : i32, i32, i32
  }
}

</mosaic_0001>

<llo_original>
// kernel: tpu_custom_call.1
$region0: #{tpu_custom_call.1}
  #allocation0 [shape = 'u32[]', space=smem, size = 0x4, offset = 0x4, fixed_abs, tag = 'smem constant byte address 0x4 - core index']
  #allocation1 [shape = 'u32[72,128]{1,0:T(1,128)}', space=vmem, size = 0x9000, scoped, tag = 'internal scratch']
  %s0 = inlined_call_operand.hbm [shape: f32[2,1024,128], index: 0, kind: input, shape index: {}]
  %s1 = inlined_call_operand.hbm [shape: f32[2,1,128], index: 1, kind: input, shape index: {}]
  %s2 = inlined_call_operand.hbm [shape: f32[2,1,128], index: 2, kind: input, shape index: {}]
  %s3 = inlined_call_operand.hbm [shape: bf16[128,128], index: 3, kind: input, shape index: {}]
  %s4 = inlined_call_operand.hbm [shape: bf16[128,128], index: 4, kind: input, shape index: {}]
  %s5 = inlined_call_operand.hbm [shape: bf16[128,128], index: 5, kind: input, shape index: {}]
  %s6 = inlined_call_operand.vmem [shape: f32[1,128], index: 6, kind: input, shape index: {}]
  %s7 = inlined_call_operand.vmem [shape: f32[1,128], index: 7, kind: input, shape index: {}]
  %s8 = inlined_call_operand.vmem [shape: f32[1,128], index: 8, kind: input, shape index: {}]
  %s9 = inlined_call_operand.hbm [shape: bf16[2,1024,128], index: 9, kind: output, shape index: {0}]
  %s10 = inlined_call_operand.hbm [shape: bf16[2,1024,128], index: 10, kind: output, shape index: {1}]
  %s11 = inlined_call_operand.hbm [shape: bf16[2,1024,128], index: 11, kind: output, shape index: {2}]
  %12 = xla_tuple %s9, %s10, %s11
  %s13 = sld [smem:[#allocation0]]
  $region109: #{tpu_custom_call.1} parent=0
    _
  %s15 = ssub.s32 1, %s13
  %s16 = scalar_select 0, %s15, %s13
  $region1: #{tpu_custom_call.1} parent=0
    #allocation2 [shape = 'u8[524288]{0}', space=vmem, size = 0x80000, scoped, tag = 'input window, operand 0']
    #allocation3 [shape = 's32[2]{0}', space=sflag, size = 0x8, scoped, tag = 'scoped memory for tpu_custom_call.1']
    #allocation4 [shape = 's32[2]{0}', space=sflag, size = 0x8, scoped, tag = 'scoped memory for tpu_custom_call.1']
    #allocation5 [shape = 'u8[1024]{0}', space=vmem, size = 0x400, scoped, tag = 'input window, operand 1']
    #allocation6 [shape = 's32[2]{0}', space=sflag, size = 0x8, scoped, tag = 'scoped memory for tpu_custom_call.1']
    #allocation7 [shape = 'u8[1024]{0}', space=vmem, size = 0x400, scoped, tag = 'input window, operand 2']
    #allocation8 [shape = 'u8[32768]{0}', space=vmem, size = 0x8000, scoped, tag = 'input window, operand 3, single buffered']
    #allocation9 [shape = 's32[1]{0}', space=sflag, size = 0x4, scoped, tag = 'scoped memory for tpu_custom_call.1']
    #allocation10 [shape = 'u8[32768]{0}', space=vmem, size = 0x8000, scoped, tag = 'input window, operand 4, single buffered']
    #allocation11 [shape = 'u8[32768]{0}', space=vmem, size = 0x8000, scoped, tag = 'input window, operand 5, single buffered']
    #allocation12 [shape = 's32[1]{0}', space=sflag, size = 0x4, scoped, tag = 'scoped memory for tpu_custom_call.1']
    #allocation13 [shape = 'u8[262144]{0}', space=vmem, size = 0x40000, scoped, tag = 'output window, operand 0']
    #allocation14 [shape = 'u8[262144]{0}', space=vmem, size = 0x40000, scoped, tag = 'output window, operand 1']
    #allocation15 [shape = 's32[2]{0}', space=sflag, size = 0x8, scoped, tag = 'scoped memory for tpu_custom_call.1']
    #allocation16 [shape = 'u8[262144]{0}', space=vmem, size = 0x40000, scoped, tag = 'output window, operand 2']
    %17 = vsyncpa [#allocation3], 0
    %s18 = scalar_lea.sflag [#allocation3], 1
    %19 = vsyncpa %s18, 0
    %20 = vsyncpa [#allocation6], 0
    %s21 = scalar_lea.sflag [#allocation6], 1
    %22 = vsyncpa %s21, 0
    %23 = vsyncpa [#allocation9], 0
    %24 = vsyncpa [#allocation12], 0
    %25 = vsyncpa [#allocation4], 0
    %s26 = scalar_lea.sflag [#allocation4], 1
    %27 = vsyncpa %s26, 0
    %28 = vsyncpa [#allocation15], 0
    %s29 = scalar_lea.sflag [#allocation15], 1
    %30 = vsyncpa %s29, 0
    loop: start=0, step=1, limit=6
    $region2: #{tpu_custom_call.1} parent=1 // loop_pre_header
      _
    $region3: #{tpu_custom_call.1} parent=1 // loop_header
      %s32 = sphi 0, %s36
      %p33 = scmp.ge.s32.totalorder %s32, 6
      %s39 = sphi 0, %s51
      %s40 = sphi 0, %s47
      %s41 = sphi 0, %s39
      %s42 = sphi 0, %s40
      %s43 = sphi 0, %s41
      %s44 = sphi 0, %s42
      %s56 = sphi 0, %s58
      %s59 = sphi 0, %s56
      %s60 = sphi 0, %s59
      %s76 = sphi 0, %s60
      %s82 = sphi 0, %s84
      %s85 = sphi 0, %s82
      %s86 = sphi 0, %s85
      %s102 = sphi 0, %s86
      %s108 = sphi 0, %s110
      %s111 = sphi 0, %s108
      %s112 = sphi 0, %s111
      %s128 = sphi 0, %s112
      %s132 = sphi 0, %s132
      %s134 = sphi 0, %s132
      %s135 = sphi 0, %s134
      %s149 = sphi 0, %s135
      %s153 = sphi 0, %s153
      %s155 = sphi 0, %s153
      %s156 = sphi 0, %s155
      %s170 = sphi 0, %s156
      %s174 = sphi 0, %s174
      %s176 = sphi 0, %s174
      %s177 = sphi 0, %s176
      %s191 = sphi 0, %s177
      %s195 = sphi 0, %s195
      %s197 = sphi 0, %s195
      %s198 = sphi 0, %s197
      %s212 = sphi 0, %s198
      %s216 = sphi 0, %s216
      %s218 = sphi 0, %s216
      %s219 = sphi 0, %s218
      %s233 = sphi 0, %s219
      %s237 = sphi 0, %s237
      %s239 = sphi 0, %s237
      %s240 = sphi 0, %s239
      %s254 = sphi 0, %s240
      %s262 = sphi 0, %s264
      %s265 = sphi 0, %s262
      %s266 = sphi 0, %s265
      %s282 = sphi 0, %s266
      %s290 = sphi 0, %s292
      %s293 = sphi 0, %s290
      %s294 = sphi 0, %s293
      %s310 = sphi 0, %s294
      %s318 = sphi 0, %s320
      %s321 = sphi 0, %s318
      %s322 = sphi 0, %s321
      %s338 = sphi 0, %s322
    $region4: #{tpu_custom_call.1} parent=1 // loop_header_branch
      %35 = sbr.rel (%p33) target = $region8
    $region5: #{tpu_custom_call.1} parent=1 // loop_body
      %s37 = ssub.s32 %s32, 1
      %s38 = ssub.s32 %s32, 2
      %s45 = sadd.s32 1, %s40
      %p46 = scmp.ge.s32.totalorder %s45, 2
      %s47 = scalar_select %p46, 0, %s45
      %s48 = sadd.s32 1, %s39
      %s49 = scalar_select %p46, %s48, %s39
      %p50 = scmp.ge.s32.totalorder %s49, 2
      %s51 = scalar_select %p50, 0, %s49
      %s52 = ssub.s32 %s39, %s51
      %s53 = ssub.s32 %s40, %s47
      %s54 = sor.u32 %s52, %s53
      %p55 = scmp.eq.s32.totalorder %s54, 0
      %s57 = sadd.s32 %s56, 1
      %s58 = scalar_select %p55, %s56, %s57
      %p61 = pneg %p55
      %p62 = scmp.eq.s32.totalorder %s32, 3
      %p63 = por %p61, %p62
      %p64 = scmp.ne.s32.totalorder %s56, %s59
      %p65 = scmp.eq.s32.totalorder %s32, 0
      %p66 = por %p64, %p65
      %p67 = scmp.ne.s32.totalorder %s56, %s59
      %p68 = scmp.eq.s32.totalorder %s37, 3
      %p69 = por %p67, %p68
      %p70 = scmp.ne.s32.totalorder %s59, %s60
      %p71 = scmp.eq.s32.totalorder %s37, 0
      %p72 = por %p70, %p71
      %p73 = scmp.ne.s32.totalorder %s59, %s60
      %p74 = scmp.eq.s32.totalorder %s38, 3
      %p75 = por %p73, %p74
      %p77 = scmp.ne.s32.totalorder %s60, %s76
      %p78 = scmp.eq.s32.totalorder %s38, 0
      %p79 = por %p77, %p78
      %s80 = ssub.s32 %s39, %s51
      %p81 = scmp.eq.s32.totalorder %s80, 0
      %s83 = sadd.s32 %s82, 1
      %s84 = scalar_select %p81, %s82, %s83
      %p87 = pneg %p81
      %p88 = scmp.eq.s32.totalorder %s32, 3
      %p89 = por %p87, %p88
      %p90 = scmp.ne.s32.totalorder %s82, %s85
      %p91 = scmp.eq.s32.totalorder %s32, 0
      %p92 = por %p90, %p91
      %p93 = scmp.ne.s32.totalorder %s82, %s85
      %p94 = scmp.eq.s32.totalorder %s37, 3
      %p95 = por %p93, %p94
      %p96 = scmp.ne.s32.totalorder %s85, %s86
      %p97 = scmp.eq.s32.totalorder %s37, 0
      %p98 = por %p96, %p97
      %p99 = scmp.ne.s32.totalorder %s85, %s86
      %p100 = scmp.eq.s32.totalorder %s38, 3
      %p101 = por %p99, %p100
      %p103 = scmp.ne.s32.totalorder %s86, %s102
      %p104 = scmp.eq.s32.totalorder %s38, 0
      %p105 = por %p103, %p104
      %s106 = ssub.s32 %s39, %s51
      %p107 = scmp.eq.s32.totalorder %s106, 0
      %s109 = sadd.s32 %s108, 1
      %s110 = scalar_select %p107, %s108, %s109
      %p113 = pneg %p107
      %p114 = scmp.eq.s32.totalorder %s32, 3
      %p115 = por %p113, %p114
      %p116 = scmp.ne.s32.totalorder %s108, %s111
      %p117 = scmp.eq.s32.totalorder %s32, 0
      %p118 = por %p116, %p117
      %p119 = scmp.ne.s32.totalorder %s108, %s111
      %p120 = scmp.eq.s32.totalorder %s37, 3
      %p121 = por %p119, %p120
      %p122 = scmp.ne.s32.totalorder %s111, %s112
      %p123 = scmp.eq.s32.totalorder %s37, 0
      %p124 = por %p122, %p123
      %p125 = scmp.ne.s32.totalorder %s111, %s112
      %p126 = scmp.eq.s32.totalorder %s38, 3
      %p127 = por %p125, %p126
      %p129 = scmp.ne.s32.totalorder %s112, %s128
      %p130 = scmp.eq.s32.totalorder %s38, 0
      %p131 = por %p129, %p130
      %s133 = sadd.s32 %s132, 1
      %p136 = scmp.eq.s32.totalorder %s32, 3
      %p137 = scmp.ne.s32.totalorder %s132, %s134
      %p138 = scmp.eq.s32.totalorder %s32, 0
      %p139 = por %p137, %p138
      %p140 = scmp.ne.s32.totalorder %s132, %s134
      %p141 = scmp.eq.s32.totalorder %s37, 3
      %p142 = por %p140, %p141
      %p143 = scmp.ne.s32.totalorder %s134, %s135
      %p144 = scmp.eq.s32.totalorder %s37, 0
      %p145 = por %p143, %p144
      %p146 = scmp.ne.s32.totalorder %s134, %s135
      %p147 = scmp.eq.s32.totalorder %s38, 3
      %p148 = por %p146, %p147
      %p150 = scmp.ne.s32.totalorder %s135, %s149
      %p151 = scmp.eq.s32.totalorder %s38, 0
      %p152 = por %p150, %p151
      %s154 = sadd.s32 %s153, 1
      %p157 = scmp.eq.s32.totalorder %s32, 3
      %p158 = scmp.ne.s32.totalorder %s153, %s155
      %p159 = scmp.eq.s32.totalorder %s32, 0
      %p160 = por %p158, %p159
      %p161 = scmp.ne.s32.totalorder %s153, %s155
      %p162 = scmp.eq.s32.totalorder %s37, 3
      %p163 = por %p161, %p162
      %p164 = scmp.ne.s32.totalorder %s155, %s156
      %p165 = scmp.eq.s32.totalorder %s37, 0
      %p166 = por %p164, %p165
      %p167 = scmp.ne.s32.totalorder %s155, %s156
      %p168 = scmp.eq.s32.totalorder %s38, 3
      %p169 = por %p167, %p168
      %p171 = scmp.ne.s32.totalorder %s156, %s170
      %p172 = scmp.eq.s32.totalorder %s38, 0
      %p173 = por %p171, %p172
      %s175 = sadd.s32 %s174, 1
      %p178 = scmp.eq.s32.totalorder %s32, 3
      %p179 = scmp.ne.s32.totalorder %s174, %s176
      %p180 = scmp.eq.s32.totalorder %s32, 0
      %p181 = por %p179, %p180
      %p182 = scmp.ne.s32.totalorder %s174, %s176
      %p183 = scmp.eq.s32.totalorder %s37, 3
      %p184 = por %p182, %p183
      %p185 = scmp.ne.s32.totalorder %s176, %s177
      %p186 = scmp.eq.s32.totalorder %s37, 0
      %p187 = por %p185, %p186
      %p188 = scmp.ne.s32.totalorder %s176, %s177
      %p189 = scmp.eq.s32.totalorder %s38, 3
      %p190 = por %p188, %p189
      %p192 = scmp.ne.s32.totalorder %s177, %s191
      %p193 = scmp.eq.s32.totalorder %s38, 0
      %p194 = por %p192, %p193
      %s196 = sadd.s32 %s195, 1
      %p199 = scmp.eq.s32.totalorder %s32, 3
      %p200 = scmp.ne.s32.totalorder %s195, %s197
      %p201 = scmp.eq.s32.totalorder %s32, 0
      %p202 = por %p200, %p201
      %p203 = scmp.ne.s32.totalorder %s195, %s197
      %p204 = scmp.eq.s32.totalorder %s37, 3
      %p205 = por %p203, %p204
      %p206 = scmp.ne.s32.totalorder %s197, %s198
      %p207 = scmp.eq.s32.totalorder %s37, 0
      %p208 = por %p206, %p207
      %p209 = scmp.ne.s32.totalorder %s197, %s198
      %p210 = scmp.eq.s32.totalorder %s38, 3
      %p211 = por %p209, %p210
      %p213 = scmp.ne.s32.totalorder %s198, %s212
      %p214 = scmp.eq.s32.totalorder %s38, 0
      %p215 = por %p213, %p214
      %s217 = sadd.s32 %s216, 1
      %p220 = scmp.eq.s32.totalorder %s32, 3
      %p221 = scmp.ne.s32.totalorder %s216, %s218
      %p222 = scmp.eq.s32.totalorder %s32, 0
      %p223 = por %p221, %p222
      %p224 = scmp.ne.s32.totalorder %s216, %s218
      %p225 = scmp.eq.s32.totalorder %s37, 3
      %p226 = por %p224, %p225
      %p227 = scmp.ne.s32.totalorder %s218, %s219
      %p228 = scmp.eq.s32.totalorder %s37, 0
      %p229 = por %p227, %p228
      %p230 = scmp.ne.s32.totalorder %s218, %s219
      %p231 = scmp.eq.s32.totalorder %s38, 3
      %p232 = por %p230, %p231
      %p234 = scmp.ne.s32.totalorder %s219, %s233
      %p235 = scmp.eq.s32.totalorder %s38, 0
      %p236 = por %p234, %p235
      %s238 = sadd.s32 %s237, 1
      %p241 = scmp.eq.s32.totalorder %s32, 3
      %p242 = scmp.ne.s32.totalorder %s237, %s239
      %p243 = scmp.eq.s32.totalorder %s32, 0
      %p244 = por %p242, %p243
      %p245 = scmp.ne.s32.totalorder %s237, %s239
      %p246 = scmp.eq.s32.totalorder %s37, 3
      %p247 = por %p245, %p246
      %p248 = scmp.ne.s32.totalorder %s239, %s240
      %p249 = scmp.eq.s32.totalorder %s37, 0
      %p250 = por %p248, %p249
      %p251 = scmp.ne.s32.totalorder %s239, %s240
      %p252 = scmp.eq.s32.totalorder %s38, 3
      %p253 = por %p251, %p252
      %p255 = scmp.ne.s32.totalorder %s240, %s254
      %p256 = scmp.eq.s32.totalorder %s38, 0
      %p257 = por %p255, %p256
      %s258 = ssub.s32 %s39, %s51
      %s259 = ssub.s32 %s40, %s47
      %s260 = sor.u32 %s258, %s259
      %p261 = scmp.eq.s32.totalorder %s260, 0
      %s263 = sadd.s32 %s262, 1
      %s264 = scalar_select %p261, %s262, %s263
      %p267 = pneg %p261
      %p268 = scmp.eq.s32.totalorder %s32, 3
      %p269 = por %p267, %p268
      %p270 = scmp.ne.s32.totalorder %s262, %s265
      %p271 = scmp.eq.s32.totalorder %s32, 0
      %p272 = por %p270, %p271
      %p273 = scmp.ne.s32.totalorder %s262, %s265
      %p274 = scmp.eq.s32.totalorder %s37, 3
      %p275 = por %p273, %p274
      %p276 = scmp.ne.s32.totalorder %s265, %s266
      %p277 = scmp.eq.s32.totalorder %s37, 0
      %p278 = por %p276, %p277
      %p279 = scmp.ne.s32.totalorder %s265, %s266
      %p280 = scmp.eq.s32.totalorder %s38, 3
      %p281 = por %p279, %p280
      %p283 = scmp.ne.s32.totalorder %s266, %s282
      %p284 = scmp.eq.s32.totalorder %s38, 0
      %p285 = por %p283, %p284
      %s286 = ssub.s32 %s39, %s51
      %s287 = ssub.s32 %s40, %s47
      %s288 = sor.u32 %s286, %s287
      %p289 = scmp.eq.s32.totalorder %s288, 0
      %s291 = sadd.s32 %s290, 1
      %s292 = scalar_select %p289, %s290, %s291
      %p295 = pneg %p289
      %p296 = scmp.eq.s32.totalorder %s32, 3
      %p297 = por %p295, %p296
      %p298 = scmp.ne.s32.totalorder %s290, %s293
      %p299 = scmp.eq.s32.totalorder %s32, 0
      %p300 = por %p298, %p299
      %p301 = scmp.ne.s32.totalorder %s290, %s293
      %p302 = scmp.eq.s32.totalorder %s37, 3
      %p303 = por %p301, %p302
      %p304 = scmp.ne.s32.totalorder %s293, %s294
      %p305 = scmp.eq.s32.totalorder %s37, 0
      %p306 = por %p304, %p305
      %p307 = scmp.ne.s32.totalorder %s293, %s294
      %p308 = scmp.eq.s32.totalorder %s38, 3
      %p309 = por %p307, %p308
      %p311 = scmp.ne.s32.totalorder %s294, %s310
      %p312 = scmp.eq.s32.totalorder %s38, 0
      %p313 = por %p311, %p312
      %s314 = ssub.s32 %s39, %s51
      %s315 = ssub.s32 %s40, %s47
      %s316 = sor.u32 %s314, %s315
      %p317 = scmp.eq.s32.totalorder %s316, 0
      %s319 = sadd.s32 %s318, 1
      %s320 = scalar_select %p317, %s318, %s319
      %p323 = pneg %p317
      %p324 = scmp.eq.s32.totalorder %s32, 3
      %p325 = por %p323, %p324
      %p326 = scmp.ne.s32.totalorder %s318, %s321
      %p327 = scmp.eq.s32.totalorder %s32, 0
      %p328 = por %p326, %p327
      %p329 = scmp.ne.s32.totalorder %s318, %s321
      %p330 = scmp.eq.s32.totalorder %s37, 3
      %p331 = por %p329, %p330
      %p332 = scmp.ne.s32.totalorder %s321, %s322
      %p333 = scmp.eq.s32.totalorder %s37, 0
      %p334 = por %p332, %p333
      %p335 = scmp.ne.s32.totalorder %s321, %s322
      %p336 = scmp.eq.s32.totalorder %s38, 3
      %p337 = por %p335, %p336
      %p339 = scmp.ne.s32.totalorder %s322, %s338
      %p340 = scmp.eq.s32.totalorder %s38, 0
      %p341 = por %p339, %p340
      %p342 = scmp.le.s32.totalorder 1, %s32
      %p343 = scmp.lt.s32.totalorder %s32, 5
      %p344 = pnand %p342, %p343
      %p345 = pneg %p344
      // Predicated region
      $region9: #{tpu_custom_call.1} parent=5 // pred_check
        _
      $region10: #{tpu_custom_call.1} parent=5 // pred_check_branch
        %347 = sbr.rel (%p344) target = $region12
      $region11: #{tpu_custom_call.1} parent=5 // pred_region
        %s348 = ssub.s32 %s32, 1
        // Predicated region
        $region13: #{tpu_custom_call.1} parent=11 // pred_check
          %p349 = pneg %p145
        $region14: #{tpu_custom_call.1} parent=11 // pred_check_branch
          %351 = sbr.rel (%p349) target = $region16
        $region15: #{tpu_custom_call.1} parent=11 // pred_region
          %353 = vsyncadd [#allocation9], 0
          %s354 = sshll.u32 %s3, 4
          %s355 = int_to_ptr.hbm [resolvable:$true] %s354
          %s356 = sshll.u32 [#allocation8], 4
          %s357 = int_to_ptr.vmem [resolvable:$true] %s356
          %362 = dma.hbm_to_vmem [thread:$0]  %s355, 1024, %s357, [#allocation9], 64, 64, 4
        $region16: #{tpu_custom_call.1} parent=11 // pred_fallthru
          _
        // Predicated region
        $region17: #{tpu_custom_call.1} parent=11 // pred_check
          %p363 = pneg %p166
        $region18: #{tpu_custom_call.1} parent=11 // pred_check_branch
          %365 = sbr.rel (%p363) target = $region20
        $region19: #{tpu_custom_call.1} parent=11 // pred_region
          %367 = vsyncadd [#allocation9], 0
          %s368 = sshll.u32 %s4, 4
          %s369 = int_to_ptr.hbm [resolvable:$true] %s368
          %s370 = sshll.u32 [#allocation10], 4
          %s371 = int_to_ptr.vmem [resolvable:$true] %s370
          %376 = dma.hbm_to_vmem [thread:$0]  %s369, 1024, %s371, [#allocation9], 64, 64, 4
        $region20: #{tpu_custom_call.1} parent=11 // pred_fallthru
          _
        // Predicated region
        $region21: #{tpu_custom_call.1} parent=11 // pred_check
          %p377 = pneg %p187
        $region22: #{tpu_custom_call.1} parent=11 // pred_check_branch
          %379 = sbr.rel (%p377) target = $region24
        $region23: #{tpu_custom_call.1} parent=11 // pred_region
          %381 = vsyncadd [#allocation12], 0
          %s382 = sshll.u32 %s5, 4
          %s383 = int_to_ptr.hbm [resolvable:$true] %s382
          %s384 = sshll.u32 [#allocation11], 4
          %s385 = int_to_ptr.vmem [resolvable:$true] %s384
          %390 = dma.hbm_to_vmem [thread:$0]  %s383, 1024, %s385, [#allocation12], 64, 64, 4
        $region24: #{tpu_custom_call.1} parent=11 // pred_fallthru
          _
        // Predicated region
        $region25: #{tpu_custom_call.1} parent=11 // pred_check
          %p391 = pneg %p208
        $region26: #{tpu_custom_call.1} parent=11 // pred_check_branch
          %393 = sbr.rel (%p391) target = $region28
        $region27: #{tpu_custom_call.1} parent=11 // pred_region
          _
        $region28: #{tpu_custom_call.1} parent=11 // pred_fallthru
          _
        // Predicated region
        $region29: #{tpu_custom_call.1} parent=11 // pred_check
          %p394 = pneg %p229
        $region30: #{tpu_custom_call.1} parent=11 // pred_check_branch
          %396 = sbr.rel (%p394) target = $region32
        $region31: #{tpu_custom_call.1} parent=11 // pred_region
          _
        $region32: #{tpu_custom_call.1} parent=11 // pred_fallthru
          _
        // Predicated region
        $region33: #{tpu_custom_call.1} parent=11 // pred_check
          %p397 = pneg %p250
        $region34: #{tpu_custom_call.1} parent=11 // pred_check_branch
          %399 = sbr.rel (%p397) target = $region36
        $region35: #{tpu_custom_call.1} parent=11 // pred_region
          _
        $region36: #{tpu_custom_call.1} parent=11 // pred_fallthru
          _
      $region12: #{tpu_custom_call.1} parent=5 // pred_fallthru
        _
      %p400 = scmp.lt.s32.totalorder %s32, 4
      // Predicated region
      $region37: #{tpu_custom_call.1} parent=5 // pred_check
        %p401 = pneg %p400
      $region38: #{tpu_custom_call.1} parent=5 // pred_check_branch
        %403 = sbr.rel (%p401) target = $region40
      $region39: #{tpu_custom_call.1} parent=5 // pred_region
        // Predicated region
        $region41: #{tpu_custom_call.1} parent=39 // pred_check
          %p404 = pneg %p66
        $region42: #{tpu_custom_call.1} parent=39 // pred_check_branch
          %406 = sbr.rel (%p404) target = $region44
        $region43: #{tpu_custom_call.1} parent=39 // pred_region
          %s407 = sand.u32 %s56, 1
          %s408 = scalar_lea.sflag [#allocation3], %s407
          %s409 = sand.u32 %s56, 1
          %s410 = smul.addr %s409, 512
          %s411 = scalar_lea.vmem [#allocation2], %s410
          %s412 = smul.u32 64, %s40
          %414 = vsyncadd %s408, 0
          %s415 = smul.addr %s39, 128
          %s416 = sadd.s32 %s412, %s415
          %s417 = smul.addr %s416, 8
          %s418 = scalar_lea.hbm %s0, %s417
          %s419 = sshll.u32 %s418, 4
          %s420 = int_to_ptr.hbm [resolvable:$true] %s419
          %s421 = sshll.u32 %s411, 4
          %s422 = int_to_ptr.vmem [resolvable:$true] %s421
          %427 = dma.hbm_to_vmem [thread:$0]  %s420, 8192, %s422, %s408, 128, 128, 8
        $region44: #{tpu_custom_call.1} parent=39 // pred_fallthru
          _
        // Predicated region
        $region45: #{tpu_custom_call.1} parent=39 // pred_check
          %p428 = pneg %p92
        $region46: #{tpu_custom_call.1} parent=39 // pred_check_branch
          %430 = sbr.rel (%p428) target = $region48
        $region47: #{tpu_custom_call.1} parent=39 // pred_region
          %s431 = sand.u32 %s32, 1
          %s432 = scalar_lea.sflag [#allocation6], %s431
          %s433 = sand.u32 %s82, 1
          %s434 = scalar_lea.vmem [#allocation5], %s433
          %436 = vsyncadd %s432, 0
          %s437 = scalar_lea.hbm %s1, %s39
          %s439 = sshll.u32 %s437, 4
          %s440 = int_to_ptr.hbm [resolvable:$true] %s439
          %s441 = sshll.u32 %s434, 4
          %s442 = int_to_ptr.vmem [resolvable:$true] %s441
          %444 = dma.hbm_to_vmem [thread:$0]  %s440, 16, %s442, %s432
        $region48: #{tpu_custom_call.1} parent=39 // pred_fallthru
          _
        // Predicated region
        $region49: #{tpu_custom_call.1} parent=39 // pred_check
          %p445 = pneg %p118
        $region50: #{tpu_custom_call.1} parent=39 // pred_check_branch
          %447 = sbr.rel (%p445) target = $region52
        $region51: #{tpu_custom_call.1} parent=39 // pred_region
          %s448 = sand.u32 %s32, 1
          %s449 = scalar_lea.sflag [#allocation6], %s448
          %s450 = sand.u32 %s108, 1
          %s451 = scalar_lea.vmem [#allocation7], %s450
          %453 = vsyncadd %s449, 0
          %s454 = scalar_lea.hbm %s2, %s39
          %s456 = sshll.u32 %s454, 4
          %s457 = int_to_ptr.hbm [resolvable:$true] %s456
          %s458 = sshll.u32 %s451, 4
          %s459 = int_to_ptr.vmem [resolvable:$true] %s458
          %461 = dma.hbm_to_vmem [thread:$0]  %s457, 16, %s459, %s449
        $region52: #{tpu_custom_call.1} parent=39 // pred_fallthru
          _
      $region40: #{tpu_custom_call.1} parent=5 // pred_fallthru
        _
      %p462 = scmp.le.s32.totalorder 1, %s32
      %p463 = scmp.lt.s32.totalorder %s32, 5
      %p464 = pnand %p462, %p463
      %p465 = pneg %p464
      // Predicated region
      $region53: #{tpu_custom_call.1} parent=5 // pred_check
        _
      $region54: #{tpu_custom_call.1} parent=5 // pred_check_branch
        %467 = sbr.rel (%p464) target = $region56
      $region55: #{tpu_custom_call.1} parent=5 // pred_region
        %s468 = ssub.s32 %s32, 1
        %s469 = sand.u32 %s59, 1
        %s470 = scalar_lea.sflag [#allocation3], %s469
        %s471 = sand.u32 %s59, 1
        %s472 = smul.addr %s471, 512
        %s473 = scalar_lea.vmem [#allocation2], %s472
        // Predicated region
        $region57: #{tpu_custom_call.1} parent=55 // pred_check
          %p474 = pneg %p72
        $region58: #{tpu_custom_call.1} parent=55 // pred_check_branch
          %476 = sbr.rel (%p474) target = $region60
        $region59: #{tpu_custom_call.1} parent=55 // pred_region
          %478 = dma.done %s470, 8192
        $region60: #{tpu_custom_call.1} parent=55 // pred_fallthru
          _
        %s479 = sand.u32 %s37, 1
        %s480 = scalar_lea.sflag [#allocation6], %s479
        %s481 = sand.u32 %s85, 1
        %s482 = scalar_lea.vmem [#allocation5], %s481
        // Predicated region
        $region61: #{tpu_custom_call.1} parent=55 // pred_check
          %p483 = pneg %p98
        $region62: #{tpu_custom_call.1} parent=55 // pred_check_branch
          %485 = sbr.rel (%p483) target = $region64
        $region63: #{tpu_custom_call.1} parent=55 // pred_region
          %487 = dma.done %s480, 16
        $region64: #{tpu_custom_call.1} parent=55 // pred_fallthru
          _
        %s488 = sand.u32 %s37, 1
        %s489 = scalar_lea.sflag [#allocation6], %s488
        %s490 = sand.u32 %s111, 1
        %s491 = scalar_lea.vmem [#allocation7], %s490
        // Predicated region
        $region65: #{tpu_custom_call.1} parent=55 // pred_check
          %p492 = pneg %p124
        $region66: #{tpu_custom_call.1} parent=55 // pred_check_branch
          %494 = sbr.rel (%p492) target = $region68
        $region67: #{tpu_custom_call.1} parent=55 // pred_region
          %496 = dma.done %s489, 16
        $region68: #{tpu_custom_call.1} parent=55 // pred_fallthru
          _
        // Predicated region
        $region69: #{tpu_custom_call.1} parent=55 // pred_check
          %p497 = pneg %p145
        $region70: #{tpu_custom_call.1} parent=55 // pred_check_branch
          %499 = sbr.rel (%p497) target = $region72
        $region71: #{tpu_custom_call.1} parent=55 // pred_region
          %501 = dma.done [#allocation9], 1024
        $region72: #{tpu_custom_call.1} parent=55 // pred_fallthru
          _
        // Predicated region
        $region73: #{tpu_custom_call.1} parent=55 // pred_check
          %p502 = pneg %p166
        $region74: #{tpu_custom_call.1} parent=55 // pred_check_branch
          %504 = sbr.rel (%p502) target = $region76
        $region75: #{tpu_custom_call.1} parent=55 // pred_region
          %506 = dma.done [#allocation9], 1024
        $region76: #{tpu_custom_call.1} parent=55 // pred_fallthru
          _
        // Predicated region
        $region77: #{tpu_custom_call.1} parent=55 // pred_check
          %p507 = pneg %p187
        $region78: #{tpu_custom_call.1} parent=55 // pred_check_branch
          %509 = sbr.rel (%p507) target = $region80
        $region79: #{tpu_custom_call.1} parent=55 // pred_region
          %511 = dma.done [#allocation12], 1024
        $region80: #{tpu_custom_call.1} parent=55 // pred_fallthru
          _
        %s512 = sand.u32 %s59, 1
        %s513 = scalar_lea.sflag [#allocation3], %s512
        %s514 = sand.u32 %s59, 1
        %s515 = smul.addr %s514, 512
        %s516 = scalar_lea.vmem [#allocation2], %s515
        %p517 = pneg %p72
        %p518 = pneg %p69
        %s519 = sand.u32 %s37, 1
        %s520 = scalar_lea.sflag [#allocation6], %s519
        %s521 = sand.u32 %s85, 1
        %s522 = scalar_lea.vmem [#allocation5], %s521
        %p523 = pneg %p98
        %p524 = pneg %p95
        %s525 = sand.u32 %s37, 1
        %s526 = scalar_lea.sflag [#allocation6], %s525
        %s527 = sand.u32 %s111, 1
        %s528 = scalar_lea.vmem [#allocation7], %s527
        %p529 = pneg %p124
        %p530 = pneg %p121
        %p531 = pneg %p145
        %p532 = pneg %p142
        %p533 = pneg %p166
        %p534 = pneg %p163
        %p535 = pneg %p187
        %p536 = pneg %p184
        %p537 = pneg %p208
        %p538 = pneg %p205
        %p539 = pneg %p229
        %p540 = pneg %p226
        %p541 = pneg %p250
        %p542 = pneg %p247
        %p543 = pneg %p278
        %p544 = pneg %p275
        %s545 = sand.u32 %s265, 1
        %s546 = scalar_lea.sflag [#allocation4], %s545
        %s547 = sand.u32 %s265, 1
        %s548 = smul.addr %s547, 256
        %s549 = scalar_lea.vmem [#allocation13], %s548
        %p550 = pneg %p306
        %p551 = pneg %p303
        %s552 = sand.u32 %s37, 1
        %s553 = scalar_lea.sflag [#allocation15], %s552
        %s554 = sand.u32 %s293, 1
        %s555 = smul.addr %s554, 256
        %s556 = scalar_lea.vmem [#allocation14], %s555
        %p557 = pneg %p334
        %p558 = pneg %p331
        %s559 = sand.u32 %s37, 1
        %s560 = scalar_lea.sflag [#allocation15], %s559
        %s561 = sand.u32 %s321, 1
        %s562 = smul.addr %s561, 256
        %s563 = scalar_lea.vmem [#allocation16], %s562
        %s564 = smul.u32 64, %s42
        %s565 = smul.u32 64, %s42
        %s566 = smul.u32 64, %s42
        %s567 = smul.u32 64, %s42
        %v568 = vld [vmem:[%s473] sm:$0xff]
        %v569 = vld [vmem:[%s473 + $0x8] sm:$0xff]
        %v570 = vld [vmem:[%s473 + $0x10] sm:$0xff]
        %v571 = vld [vmem:[%s473 + $0x18] sm:$0xff]
        %v572 = vld [vmem:[%s473 + $0x20] sm:$0xff]
        %v573 = vld [vmem:[%s473 + $0x28] sm:$0xff]
        %v574 = vld [vmem:[%s473 + $0x30] sm:$0xff]
        %v575 = vld [vmem:[%s473 + $0x38] sm:$0xff]
        %v576 = vld [vmem:[%s473 + $0x40] sm:$0xff]
        %v577 = vld [vmem:[%s473 + $0x48] sm:$0xff]
        %v578 = vld [vmem:[%s473 + $0x50] sm:$0xff]
        %v579 = vld [vmem:[%s473 + $0x58] sm:$0xff]
        %v580 = vld [vmem:[%s473 + $0x60] sm:$0xff]
        %v581 = vld [vmem:[%s473 + $0x68] sm:$0xff]
        %v582 = vld [vmem:[%s473 + $0x70] sm:$0xff]
        %v583 = vld [vmem:[%s473 + $0x78] sm:$0xff]
        %v584 = vld [vmem:[%s473 + $0x80] sm:$0xff]
        %v585 = vld [vmem:[%s473 + $0x88] sm:$0xff]
        %v586 = vld [vmem:[%s473 + $0x90] sm:$0xff]
        %v587 = vld [vmem:[%s473 + $0x98] sm:$0xff]
        %v588 = vld [vmem:[%s473 + $0xa0] sm:$0xff]
        %v589 = vld [vmem:[%s473 + $0xa8] sm:$0xff]
        %v590 = vld [vmem:[%s473 + $0xb0] sm:$0xff]
        %v591 = vld [vmem:[%s473 + $0xb8] sm:$0xff]
        %v592 = vld [vmem:[%s473 + $0xc0] sm:$0xff]
        %v593 = vld [vmem:[%s473 + $0xc8] sm:$0xff]
        %v594 = vld [vmem:[%s473 + $0xd0] sm:$0xff]
        %v595 = vld [vmem:[%s473 + $0xd8] sm:$0xff]
        %v596 = vld [vmem:[%s473 + $0xe0] sm:$0xff]
        %v597 = vld [vmem:[%s473 + $0xe8] sm:$0xff]
        %v598 = vld [vmem:[%s473 + $0xf0] sm:$0xff]
        %v599 = vld [vmem:[%s473 + $0xf8] sm:$0xff]
        %v600 = vld [vmem:[%s473 + $0x100] sm:$0xff]
        %v601 = vld [vmem:[%s473 + $0x108] sm:$0xff]
        %v602 = vld [vmem:[%s473 + $0x110] sm:$0xff]
        %v603 = vld [vmem:[%s473 + $0x118] sm:$0xff]
        %v604 = vld [vmem:[%s473 + $0x120] sm:$0xff]
        %v605 = vld [vmem:[%s473 + $0x128] sm:$0xff]
        %v606 = vld [vmem:[%s473 + $0x130] sm:$0xff]
        %v607 = vld [vmem:[%s473 + $0x138] sm:$0xff]
        %v608 = vld [vmem:[%s473 + $0x140] sm:$0xff]
        %v609 = vld [vmem:[%s473 + $0x148] sm:$0xff]
        %v610 = vld [vmem:[%s473 + $0x150] sm:$0xff]
        %v611 = vld [vmem:[%s473 + $0x158] sm:$0xff]
        %v612 = vld [vmem:[%s473 + $0x160] sm:$0xff]
        %v613 = vld [vmem:[%s473 + $0x168] sm:$0xff]
        %v614 = vld [vmem:[%s473 + $0x170] sm:$0xff]
        %v615 = vld [vmem:[%s473 + $0x178] sm:$0xff]
        %v616 = vld [vmem:[%s473 + $0x180] sm:$0xff]
        %v617 = vld [vmem:[%s473 + $0x188] sm:$0xff]
        %v618 = vld [vmem:[%s473 + $0x190] sm:$0xff]
        %v619 = vld [vmem:[%s473 + $0x198] sm:$0xff]
        %v620 = vld [vmem:[%s473 + $0x1a0] sm:$0xff]
        %v621 = vld [vmem:[%s473 + $0x1a8] sm:$0xff]
        %v622 = vld [vmem:[%s473 + $0x1b0] sm:$0xff]
        %v623 = vld [vmem:[%s473 + $0x1b8] sm:$0xff]
        %v624 = vld [vmem:[%s473 + $0x1c0] sm:$0xff]
        %v625 = vld [vmem:[%s473 + $0x1c8] sm:$0xff]
        %v626 = vld [vmem:[%s473 + $0x1d0] sm:$0xff]
        %v627 = vld [vmem:[%s473 + $0x1d8] sm:$0xff]
        %v628 = vld [vmem:[%s473 + $0x1e0] sm:$0xff]
        %v629 = vld [vmem:[%s473 + $0x1e8] sm:$0xff]
        %v630 = vld [vmem:[%s473 + $0x1f0] sm:$0xff]
        %v631 = vld [vmem:[%s473 + $0x1f8] sm:$0xff]
        %v632 = vld [vmem:[%s482] sm:$0x1]
        %v634 = vperm.slane %v632, 0
        %v636 = vmul.f32 %v568, %v634
        %v637 = vmul.f32 %v569, %v634
        %v638 = vmul.f32 %v570, %v634
        %v639 = vmul.f32 %v571, %v634
        %v640 = vmul.f32 %v572, %v634
        %v641 = vmul.f32 %v573, %v634
        %v642 = vmul.f32 %v574, %v634
        %v643 = vmul.f32 %v575, %v634
        %v644 = vmul.f32 %v576, %v634
        %v645 = vmul.f32 %v577, %v634
        %v646 = vmul.f32 %v578, %v634
        %v647 = vmul.f32 %v579, %v634
        %v648 = vmul.f32 %v580, %v634
        %v649 = vmul.f32 %v581, %v634
        %v650 = vmul.f32 %v582, %v634
        %v651 = vmul.f32 %v583, %v634
        %v652 = vmul.f32 %v584, %v634
        %v653 = vmul.f32 %v585, %v634
        %v654 = vmul.f32 %v586, %v634
        %v655 = vmul.f32 %v587, %v634
        %v656 = vmul.f32 %v588, %v634
        %v657 = vmul.f32 %v589, %v634
        %v658 = vmul.f32 %v590, %v634
        %v659 = vmul.f32 %v591, %v634
        %v660 = vmul.f32 %v592, %v634
        %v661 = vmul.f32 %v593, %v634
        %v662 = vmul.f32 %v594, %v634
        %v663 = vmul.f32 %v595, %v634
        %v664 = vmul.f32 %v596, %v634
        %v665 = vmul.f32 %v597, %v634
        %v666 = vmul.f32 %v598, %v634
        %v667 = vmul.f32 %v599, %v634
        %v668 = vmul.f32 %v600, %v634
        %v669 = vmul.f32 %v601, %v634
        %v670 = vmul.f32 %v602, %v634
        %v671 = vmul.f32 %v603, %v634
        %v672 = vmul.f32 %v604, %v634
        %v673 = vmul.f32 %v605, %v634
        %v674 = vmul.f32 %v606, %v634
        %v675 = vmul.f32 %v607, %v634
        %v676 = vmul.f32 %v608, %v634
        %v677 = vmul.f32 %v609, %v634
        %v678 = vmul.f32 %v610, %v634
        %v679 = vmul.f32 %v611, %v634
        %v680 = vmul.f32 %v612, %v634
        %v681 = vmul.f32 %v613, %v634
        %v682 = vmul.f32 %v614, %v634
        %v683 = vmul.f32 %v615, %v634
        %v684 = vmul.f32 %v616, %v634
        %v685 = vmul.f32 %v617, %v634
        %v686 = vmul.f32 %v618, %v634
        %v687 = vmul.f32 %v619, %v634
        %v688 = vmul.f32 %v620, %v634
        %v689 = vmul.f32 %v621, %v634
        %v690 = vmul.f32 %v622, %v634
        %v691 = vmul.f32 %v623, %v634
        %v692 = vmul.f32 %v624, %v634
        %v693 = vmul.f32 %v625, %v634
        %v694 = vmul.f32 %v626, %v634
        %v695 = vmul.f32 %v627, %v634
        %v696 = vmul.f32 %v628, %v634
        %v697 = vmul.f32 %v629, %v634
        %v698 = vmul.f32 %v630, %v634
        %v699 = vmul.f32 %v631, %v634
        %v700 = vld [vmem:[%s491] sm:$0x1]
        %v702 = vperm.slane %v700, 0
        %v704 = vadd.f32 %v636, %v702
        %v705 = vadd.f32 %v637, %v702
        %v706 = vadd.f32 %v638, %v702
        %v707 = vadd.f32 %v639, %v702
        %v708 = vadd.f32 %v640, %v702
        %v709 = vadd.f32 %v641, %v702
        %v710 = vadd.f32 %v642, %v702
        %v711 = vadd.f32 %v643, %v702
        %v712 = vadd.f32 %v644, %v702
        %v713 = vadd.f32 %v645, %v702
        %v714 = vadd.f32 %v646, %v702
        %v715 = vadd.f32 %v647, %v702
        %v716 = vadd.f32 %v648, %v702
        %v717 = vadd.f32 %v649, %v702
        %v718 = vadd.f32 %v650, %v702
        %v719 = vadd.f32 %v651, %v702
        %v720 = vadd.f32 %v652, %v702
        %v721 = vadd.f32 %v653, %v702
        %v722 = vadd.f32 %v654, %v702
        %v723 = vadd.f32 %v655, %v702
        %v724 = vadd.f32 %v656, %v702
        %v725 = vadd.f32 %v657, %v702
        %v726 = vadd.f32 %v658, %v702
        %v727 = vadd.f32 %v659, %v702
        %v728 = vadd.f32 %v660, %v702
        %v729 = vadd.f32 %v661, %v702
        %v730 = vadd.f32 %v662, %v702
        %v731 = vadd.f32 %v663, %v702
        %v732 = vadd.f32 %v664, %v702
        %v733 = vadd.f32 %v665, %v702
        %v734 = vadd.f32 %v666, %v702
        %v735 = vadd.f32 %v667, %v702
        %v736 = vadd.f32 %v668, %v702
        %v737 = vadd.f32 %v669, %v702
        %v738 = vadd.f32 %v670, %v702
        %v739 = vadd.f32 %v671, %v702
        %v740 = vadd.f32 %v672, %v702
        %v741 = vadd.f32 %v673, %v702
        %v742 = vadd.f32 %v674, %v702
        %v743 = vadd.f32 %v675, %v702
        %v744 = vadd.f32 %v676, %v702
        %v745 = vadd.f32 %v677, %v702
        %v746 = vadd.f32 %v678, %v702
        %v747 = vadd.f32 %v679, %v702
        %v748 = vadd.f32 %v680, %v702
        %v749 = vadd.f32 %v681, %v702
        %v750 = vadd.f32 %v682, %v702
        %v751 = vadd.f32 %v683, %v702
        %v752 = vadd.f32 %v684, %v702
        %v753 = vadd.f32 %v685, %v702
        %v754 = vadd.f32 %v686, %v702
        %v755 = vadd.f32 %v687, %v702
        %v756 = vadd.f32 %v688, %v702
        %v757 = vadd.f32 %v689, %v702
        %v758 = vadd.f32 %v690, %v702
        %v759 = vadd.f32 %v691, %v702
        %v760 = vadd.f32 %v692, %v702
        %v761 = vadd.f32 %v693, %v702
        %v762 = vadd.f32 %v694, %v702
        %v763 = vadd.f32 %v695, %v702
        %v764 = vadd.f32 %v696, %v702
        %v765 = vadd.f32 %v697, %v702
        %v766 = vadd.f32 %v698, %v702
        %v767 = vadd.f32 %v699, %v702
        %v768 = vpack.c.bf16 %v705, %v704
        %v769 = vpack.c.bf16 %v707, %v706
        %v770 = vpack.c.bf16 %v709, %v708
        %v771 = vpack.c.bf16 %v711, %v710
        %v772 = vpack.c.bf16 %v713, %v712
        %v773 = vpack.c.bf16 %v715, %v714
        %v774 = vpack.c.bf16 %v717, %v716
        %v775 = vpack.c.bf16 %v719, %v718
        %v776 = vpack.c.bf16 %v721, %v720
        %v777 = vpack.c.bf16 %v723, %v722
        %v778 = vpack.c.bf16 %v725, %v724
        %v779 = vpack.c.bf16 %v727, %v726
        %v780 = vpack.c.bf16 %v729, %v728
        %v781 = vpack.c.bf16 %v731, %v730
        %v782 = vpack.c.bf16 %v733, %v732
        %v783 = vpack.c.bf16 %v735, %v734
        %v784 = vpack.c.bf16 %v737, %v736
        %v785 = vpack.c.bf16 %v739, %v738
        %v786 = vpack.c.bf16 %v741, %v740
        %v787 = vpack.c.bf16 %v743, %v742
        %v788 = vpack.c.bf16 %v745, %v744
        %v789 = vpack.c.bf16 %v747, %v746
        %v790 = vpack.c.bf16 %v749, %v748
        %v791 = vpack.c.bf16 %v751, %v750
        %v792 = vpack.c.bf16 %v753, %v752
        %v793 = vpack.c.bf16 %v755, %v754
        %v794 = vpack.c.bf16 %v757, %v756
        %v795 = vpack.c.bf16 %v759, %v758
        %v796 = vpack.c.bf16 %v761, %v760
        %v797 = vpack.c.bf16 %v763, %v762
        %v798 = vpack.c.bf16 %v765, %v764
        %v799 = vpack.c.bf16 %v767, %v766
        %v800 = vld [vmem:[#allocation8] sm:$0xf]
        %v801 = vld [vmem:[#allocation8 + $0x4] sm:$0xf]
        %v802 = vld [vmem:[#allocation8 + $0x8] sm:$0xf]
        %v803 = vld [vmem:[#allocation8 + $0xc] sm:$0xf]
        %v804 = vld [vmem:[#allocation8 + $0x10] sm:$0xf]
        %v805 = vld [vmem:[#allocation8 + $0x14] sm:$0xf]
        %v806 = vld [vmem:[#allocation8 + $0x18] sm:$0xf]
        %v807 = vld [vmem:[#allocation8 + $0x1c] sm:$0xf]
        %v808 = vld [vmem:[#allocation8 + $0x20] sm:$0xf]
        %v809 = vld [vmem:[#allocation8 + $0x24] sm:$0xf]
        %v810 = vld [vmem:[#allocation8 + $0x28] sm:$0xf]
        %v811 = vld [vmem:[#allocation8 + $0x2c] sm:$0xf]
        %v812 = vld [vmem:[#allocation8 + $0x30] sm:$0xf]
        %v813 = vld [vmem:[#allocation8 + $0x34] sm:$0xf]
        %v814 = vld [vmem:[#allocation8 + $0x38] sm:$0xf]
        %v815 = vld [vmem:[#allocation8 + $0x3c] sm:$0xf]
        %v816 = vld [vmem:[%s6] sm:$0x1]
        %v818 = vperm.slane %v816, 0
        %v836 = vunpack.c.l.b16 %v800
        %v837 = vunpack.c.l.b16 %v801
        %v838 = vunpack.c.l.b16 %v802
        %v839 = vunpack.c.l.b16 %v803
        %v840 = vunpack.c.l.b16 %v804
        %v841 = vunpack.c.l.b16 %v805
        %v842 = vunpack.c.l.b16 %v806
        %v843 = vunpack.c.l.b16 %v807
        %v844 = vunpack.c.l.b16 %v808
        %v845 = vunpack.c.l.b16 %v809
        %v846 = vunpack.c.l.b16 %v810
        %v847 = vunpack.c.l.b16 %v811
        %v848 = vunpack.c.l.b16 %v812
        %v849 = vunpack.c.l.b16 %v813
        %v850 = vunpack.c.l.b16 %v814
        %v851 = vunpack.c.l.b16 %v815
        %v852 = vpack.c.b16 %v837, %v836
        %v853 = vpack.c.b16 %v839, %v838
        %v854 = vpack.c.b16 %v841, %v840
        %v855 = vpack.c.b16 %v843, %v842
        %v856 = vpack.c.b16 %v845, %v844
        %v857 = vpack.c.b16 %v847, %v846
        %v858 = vpack.c.b16 %v849, %v848
        %v859 = vpack.c.b16 %v851, %v850
        %868 = vmatpush.bf16.msra.mxu0 %v859
        %869 = vmatpush.bf16.msra.mxu0 %v858
        %870 = vmatpush.bf16.msra.mxu0 %v857
        %871 = vmatpush.bf16.msra.mxu0 %v856
        %872 = vmatpush.bf16.msra.mxu0 %v855
        %873 = vmatpush.bf16.msra.mxu0 %v854
        %874 = vmatpush.bf16.msra.mxu0 %v853
        %875 = vmatpush.bf16.msra.mxu0 %v852
        %876 = vmatmul.bf16.gmra.mxu0 %v768
        %v877 = vpop.f32.mrf.mxu0
        %v878 = vadd.f32 %v818, %v877
        %v879 = vpop.f32.mrf.mxu0
        %v880 = vadd.f32 %v818, %v879
        %881 = vmatmul.bf16.gmra.mxu0 %v769
        %v882 = vpop.f32.mrf.mxu0
        %v883 = vadd.f32 %v818, %v882
        %v884 = vpop.f32.mrf.mxu0
        %v885 = vadd.f32 %v818, %v884
        %886 = vmatmul.bf16.gmra.mxu0 %v770
        %v887 = vpop.f32.mrf.mxu0
        %v888 = vadd.f32 %v818, %v887
        %v889 = vpop.f32.mrf.mxu0
        %v890 = vadd.f32 %v818, %v889
        %891 = vmatmul.bf16.gmra.mxu0 %v771
        %v892 = vpop.f32.mrf.mxu0
        %v893 = vadd.f32 %v818, %v892
        %v894 = vpop.f32.mrf.mxu0
        %v895 = vadd.f32 %v818, %v894
        %896 = vmatmul.bf16.gmra.mxu0 %v772
        %v897 = vpop.f32.mrf.mxu0
        %v898 = vadd.f32 %v818, %v897
        %v899 = vpop.f32.mrf.mxu0
        %v900 = vadd.f32 %v818, %v899
        %901 = vmatmul.bf16.gmra.mxu0 %v773
        %v902 = vpop.f32.mrf.mxu0
        %v903 = vadd.f32 %v818, %v902
        %v904 = vpop.f32.mrf.mxu0
        %v905 = vadd.f32 %v818, %v904
        %906 = vmatmul.bf16.gmra.mxu0 %v774
        %v907 = vpop.f32.mrf.mxu0
        %v908 = vadd.f32 %v818, %v907
        %v909 = vpop.f32.mrf.mxu0
        %v910 = vadd.f32 %v818, %v909
        %911 = vmatmul.bf16.gmra.mxu0 %v775
        %v912 = vpop.f32.mrf.mxu0
        %v913 = vadd.f32 %v818, %v912
        %v914 = vpop.f32.mrf.mxu0
        %v915 = vadd.f32 %v818, %v914
        %916 = vmatmul.bf16.gmra.mxu0 %v776
        %v917 = vpop.f32.mrf.mxu0
        %v918 = vadd.f32 %v818, %v917
        %v919 = vpop.f32.mrf.mxu0
        %v920 = vadd.f32 %v818, %v919
        %921 = vmatmul.bf16.gmra.mxu0 %v777
        %v922 = vpop.f32.mrf.mxu0
        %v923 = vadd.f32 %v818, %v922
        %v924 = vpop.f32.mrf.mxu0
        %v925 = vadd.f32 %v818, %v924
        %926 = vmatmul.bf16.gmra.mxu0 %v778
        %v927 = vpop.f32.mrf.mxu0
        %v928 = vadd.f32 %v818, %v927
        %v929 = vpop.f32.mrf.mxu0
        %v930 = vadd.f32 %v818, %v929
        %931 = vmatmul.bf16.gmra.mxu0 %v779
        %v932 = vpop.f32.mrf.mxu0
        %v933 = vadd.f32 %v818, %v932
        %v934 = vpop.f32.mrf.mxu0
        %v935 = vadd.f32 %v818, %v934
        %936 = vmatmul.bf16.gmra.mxu0 %v780
        %v937 = vpop.f32.mrf.mxu0
        %v938 = vadd.f32 %v818, %v937
        %v939 = vpop.f32.mrf.mxu0
        %v940 = vadd.f32 %v818, %v939
        %941 = vmatmul.bf16.gmra.mxu0 %v781
        %v942 = vpop.f32.mrf.mxu0
        %v943 = vadd.f32 %v818, %v942
        %v944 = vpop.f32.mrf.mxu0
        %v945 = vadd.f32 %v818, %v944
        %946 = vmatmul.bf16.gmra.mxu0 %v782
        %v947 = vpop.f32.mrf.mxu0
        %v948 = vadd.f32 %v818, %v947
        %v949 = vpop.f32.mrf.mxu0
        %v950 = vadd.f32 %v818, %v949
        %951 = vmatmul.bf16.gmra.mxu0 %v783
        %v952 = vpop.f32.mrf.mxu0
        %v953 = vadd.f32 %v818, %v952
        %v954 = vpop.f32.mrf.mxu0
        %v955 = vadd.f32 %v818, %v954
        %956 = vmatmul.bf16.gmra.mxu0 %v784
        %v957 = vpop.f32.mrf.mxu0
        %v958 = vadd.f32 %v818, %v957
        %v959 = vpop.f32.mrf.mxu0
        %v960 = vadd.f32 %v818, %v959
        %961 = vmatmul.bf16.gmra.mxu0 %v785
        %v962 = vpop.f32.mrf.mxu0
        %v963 = vadd.f32 %v818, %v962
        %v964 = vpop.f32.mrf.mxu0
        %v965 = vadd.f32 %v818, %v964
        %966 = vmatmul.bf16.gmra.mxu0 %v786
        %v967 = vpop.f32.mrf.mxu0
        %v968 = vadd.f32 %v818, %v967
        %v969 = vpop.f32.mrf.mxu0
        %v970 = vadd.f32 %v818, %v969
        %971 = vmatmul.bf16.gmra.mxu0 %v787
        %v972 = vpop.f32.mrf.mxu0
        %v973 = vadd.f32 %v818, %v972
        %v974 = vpop.f32.mrf.mxu0
        %v975 = vadd.f32 %v818, %v974
        %976 = vmatmul.bf16.gmra.mxu0 %v788
        %v977 = vpop.f32.mrf.mxu0
        %v978 = vadd.f32 %v818, %v977
        %v979 = vpop.f32.mrf.mxu0
        %v980 = vadd.f32 %v818, %v979
        %981 = vmatmul.bf16.gmra.mxu0 %v789
        %v982 = vpop.f32.mrf.mxu0
        %v983 = vadd.f32 %v818, %v982
        %v984 = vpop.f32.mrf.mxu0
        %v985 = vadd.f32 %v818, %v984
        %986 = vmatmul.bf16.gmra.mxu0 %v790
        %v987 = vpop.f32.mrf.mxu0
        %v988 = vadd.f32 %v818, %v987
        %v989 = vpop.f32.mrf.mxu0
        %v990 = vadd.f32 %v818, %v989
        %991 = vmatmul.bf16.gmra.mxu0 %v791
        %v992 = vpop.f32.mrf.mxu0
        %v993 = vadd.f32 %v818, %v992
        %v994 = vpop.f32.mrf.mxu0
        %v995 = vadd.f32 %v818, %v994
        %996 = vmatmul.bf16.gmra.mxu0 %v792
        %v997 = vpop.f32.mrf.mxu0
        %v998 = vadd.f32 %v818, %v997
        %v999 = vpop.f32.mrf.mxu0
        %v1000 = vadd.f32 %v818, %v999
        %1001 = vmatmul.bf16.gmra.mxu0 %v793
        %v1002 = vpop.f32.mrf.mxu0
        %v1003 = vadd.f32 %v818, %v1002
        %v1004 = vpop.f32.mrf.mxu0
        %v1005 = vadd.f32 %v818, %v1004
        %1006 = vmatmul.bf16.gmra.mxu0 %v794
        %v1007 = vpop.f32.mrf.mxu0
        %v1008 = vadd.f32 %v818, %v1007
        %v1009 = vpop.f32.mrf.mxu0
        %v1010 = vadd.f32 %v818, %v1009
        %1011 = vmatmul.bf16.gmra.mxu0 %v795
        %v1012 = vpop.f32.mrf.mxu0
        %v1013 = vadd.f32 %v818, %v1012
        %v1014 = vpop.f32.mrf.mxu0
        %v1015 = vadd.f32 %v818, %v1014
        %1016 = vmatmul.bf16.gmra.mxu0 %v796
        %v1017 = vpop.f32.mrf.mxu0
        %v1018 = vadd.f32 %v818, %v1017
        %v1019 = vpop.f32.mrf.mxu0
        %v1020 = vadd.f32 %v818, %v1019
        %1021 = vmatmul.bf16.gmra.mxu0 %v797
        %v1022 = vpop.f32.mrf.mxu0
        %v1023 = vadd.f32 %v818, %v1022
        %v1024 = vpop.f32.mrf.mxu0
        %v1025 = vadd.f32 %v818, %v1024
        %1026 = vmatmul.bf16.gmra.mxu0 %v798
        %v1027 = vpop.f32.mrf.mxu0
        %v1028 = vadd.f32 %v818, %v1027
        %v1029 = vpop.f32.mrf.mxu0
        %v1030 = vadd.f32 %v818, %v1029
        %1031 = vmatmul.bf16.gmra.mxu0 %v799
        %v1032 = vpop.f32.mrf.mxu0
        %v1033 = vadd.f32 %v818, %v1032
        %v1034 = vpop.f32.mrf.mxu0
        %v1035 = vadd.f32 %v818, %v1034
        %1036 = vdwg.mxu0
        %v1037 = vpack.c.bf16 %v878, %v878
        %v1038 = vpack.c.bf16 %v880, %v880
        %v1039 = vpack.c.bf16 %v883, %v883
        %v1040 = vpack.c.bf16 %v885, %v885
        %v1041 = vpack.c.bf16 %v888, %v888
        %v1042 = vpack.c.bf16 %v890, %v890
        %v1043 = vpack.c.bf16 %v893, %v893
        %v1044 = vpack.c.bf16 %v895, %v895
        %v1045 = vpack.c.bf16 %v898, %v898
        %v1046 = vpack.c.bf16 %v900, %v900
        %v1047 = vpack.c.bf16 %v903, %v903
        %v1048 = vpack.c.bf16 %v905, %v905
        %v1049 = vpack.c.bf16 %v908, %v908
        %v1050 = vpack.c.bf16 %v910, %v910
        %v1051 = vpack.c.bf16 %v913, %v913
        %v1052 = vpack.c.bf16 %v915, %v915
        %v1053 = vpack.c.bf16 %v918, %v918
        %v1054 = vpack.c.bf16 %v920, %v920
        %v1055 = vpack.c.bf16 %v923, %v923
        %v1056 = vpack.c.bf16 %v925, %v925
        %v1057 = vpack.c.bf16 %v928, %v928
        %v1058 = vpack.c.bf16 %v930, %v930
        %v1059 = vpack.c.bf16 %v933, %v933
        %v1060 = vpack.c.bf16 %v935, %v935
        %v1061 = vpack.c.bf16 %v938, %v938
        %v1062 = vpack.c.bf16 %v940, %v940
        %v1063 = vpack.c.bf16 %v943, %v943
        %v1064 = vpack.c.bf16 %v945, %v945
        %v1065 = vpack.c.bf16 %v948, %v948
        %v1066 = vpack.c.bf16 %v950, %v950
        %v1067 = vpack.c.bf16 %v953, %v953
        %v1068 = vpack.c.bf16 %v955, %v955
        %v1069 = vpack.c.bf16 %v958, %v958
        %v1070 = vpack.c.bf16 %v960, %v960
        %v1071 = vpack.c.bf16 %v963, %v963
        %v1072 = vpack.c.bf16 %v965, %v965
        %v1073 = vpack.c.bf16 %v968, %v968
        %v1074 = vpack.c.bf16 %v970, %v970
        %v1075 = vpack.c.bf16 %v973, %v973
        %v1076 = vpack.c.bf16 %v975, %v975
        %v1077 = vpack.c.bf16 %v978, %v978
        %v1078 = vpack.c.bf16 %v980, %v980
        %v1079 = vpack.c.bf16 %v983, %v983
        %v1080 = vpack.c.bf16 %v985, %v985
        %v1081 = vpack.c.bf16 %v988, %v988
        %v1082 = vpack.c.bf16 %v990, %v990
        %v1083 = vpack.c.bf16 %v993, %v993
        %v1084 = vpack.c.bf16 %v995, %v995
        %v1085 = vpack.c.bf16 %v998, %v998
        %v1086 = vpack.c.bf16 %v1000, %v1000
        %v1087 = vpack.c.bf16 %v1003, %v1003
        %v1088 = vpack.c.bf16 %v1005, %v1005
        %v1089 = vpack.c.bf16 %v1008, %v1008
        %v1090 = vpack.c.bf16 %v1010, %v1010
        %v1091 = vpack.c.bf16 %v1013, %v1013
        %v1092 = vpack.c.bf16 %v1015, %v1015
        %v1093 = vpack.c.bf16 %v1018, %v1018
        %v1094 = vpack.c.bf16 %v1020, %v1020
        %v1095 = vpack.c.bf16 %v1023, %v1023
        %v1096 = vpack.c.bf16 %v1025, %v1025
        %v1097 = vpack.c.bf16 %v1028, %v1028
        %v1098 = vpack.c.bf16 %v1030, %v1030
        %v1099 = vpack.c.bf16 %v1033, %v1033
        %v1100 = vpack.c.bf16 %v1035, %v1035
        %1101 = vst [vmem:[%s549] sm:$0xf] %v1037
        %1102 = vst [vmem:[%s549 + $0x4] sm:$0xf] %v1038
        %1103 = vst [vmem:[%s549 + $0x8] sm:$0xf] %v1039
        %1104 = vst [vmem:[%s549 + $0xc] sm:$0xf] %v1040
        %1105 = vst [vmem:[%s549 + $0x10] sm:$0xf] %v1041
        %1106 = vst [vmem:[%s549 + $0x14] sm:$0xf] %v1042
        %1107 = vst [vmem:[%s549 + $0x18] sm:$0xf] %v1043
        %1108 = vst [vmem:[%s549 + $0x1c] sm:$0xf] %v1044
        %1109 = vst [vmem:[%s549 + $0x20] sm:$0xf] %v1045
        %1110 = vst [vmem:[%s549 + $0x24] sm:$0xf] %v1046
        %1111 = vst [vmem:[%s549 + $0x28] sm:$0xf] %v1047
        %1112 = vst [vmem:[%s549 + $0x2c] sm:$0xf] %v1048
        %1113 = vst [vmem:[%s549 + $0x30] sm:$0xf] %v1049
        %1114 = vst [vmem:[%s549 + $0x34] sm:$0xf] %v1050
        %1115 = vst [vmem:[%s549 + $0x38] sm:$0xf] %v1051
        %1116 = vst [vmem:[%s549 + $0x3c] sm:$0xf] %v1052
        %1117 = vst [vmem:[%s549 + $0x40] sm:$0xf] %v1053
        %1118 = vst [vmem:[%s549 + $0x44] sm:$0xf] %v1054
        %1119 = vst [vmem:[%s549 + $0x48] sm:$0xf] %v1055
        %1120 = vst [vmem:[%s549 + $0x4c] sm:$0xf] %v1056
        %1121 = vst [vmem:[%s549 + $0x50] sm:$0xf] %v1057
        %1122 = vst [vmem:[%s549 + $0x54] sm:$0xf] %v1058
        %1123 = vst [vmem:[%s549 + $0x58] sm:$0xf] %v1059
        %1124 = vst [vmem:[%s549 + $0x5c] sm:$0xf] %v1060
        %1125 = vst [vmem:[%s549 + $0x60] sm:$0xf] %v1061
        %1126 = vst [vmem:[%s549 + $0x64] sm:$0xf] %v1062
        %1127 = vst [vmem:[%s549 + $0x68] sm:$0xf] %v1063
        %1128 = vst [vmem:[%s549 + $0x6c] sm:$0xf] %v1064
        %1129 = vst [vmem:[%s549 + $0x70] sm:$0xf] %v1065
        %1130 = vst [vmem:[%s549 + $0x74] sm:$0xf] %v1066
        %1131 = vst [vmem:[%s549 + $0x78] sm:$0xf] %v1067
        %1132 = vst [vmem:[%s549 + $0x7c] sm:$0xf] %v1068
        %1133 = vst [vmem:[%s549 + $0x80] sm:$0xf] %v1069
        %1134 = vst [vmem:[%s549 + $0x84] sm:$0xf] %v1070
        %1135 = vst [vmem:[%s549 + $0x88] sm:$0xf] %v1071
        %1136 = vst [vmem:[%s549 + $0x8c] sm:$0xf] %v1072
        %1137 = vst [vmem:[%s549 + $0x90] sm:$0xf] %v1073
        %1138 = vst [vmem:[%s549 + $0x94] sm:$0xf] %v1074
        %1139 = vst [vmem:[%s549 + $0x98] sm:$0xf] %v1075
        %1140 = vst [vmem:[%s549 + $0x9c] sm:$0xf] %v1076
        %1141 = vst [vmem:[%s549 + $0xa0] sm:$0xf] %v1077
        %1142 = vst [vmem:[%s549 + $0xa4] sm:$0xf] %v1078
        %1143 = vst [vmem:[%s549 + $0xa8] sm:$0xf] %v1079
        %1144 = vst [vmem:[%s549 + $0xac] sm:$0xf] %v1080
        %1145 = vst [vmem:[%s549 + $0xb0] sm:$0xf] %v1081
        %1146 = vst [vmem:[%s549 + $0xb4] sm:$0xf] %v1082
        %1147 = vst [vmem:[%s549 + $0xb8] sm:$0xf] %v1083
        %1148 = vst [vmem:[%s549 + $0xbc] sm:$0xf] %v1084
        %1149 = vst [vmem:[%s549 + $0xc0] sm:$0xf] %v1085
        %1150 = vst [vmem:[%s549 + $0xc4] sm:$0xf] %v1086
        %1151 = vst [vmem:[%s549 + $0xc8] sm:$0xf] %v1087
        %1152 = vst [vmem:[%s549 + $0xcc] sm:$0xf] %v1088
        %1153 = vst [vmem:[%s549 + $0xd0] sm:$0xf] %v1089
        %1154 = vst [vmem:[%s549 + $0xd4] sm:$0xf] %v1090
        %1155 = vst [vmem:[%s549 + $0xd8] sm:$0xf] %v1091
        %1156 = vst [vmem:[%s549 + $0xdc] sm:$0xf] %v1092
        %1157 = vst [vmem:[%s549 + $0xe0] sm:$0xf] %v1093
        %1158 = vst [vmem:[%s549 + $0xe4] sm:$0xf] %v1094
        %1159 = vst [vmem:[%s549 + $0xe8] sm:$0xf] %v1095
        %1160 = vst [vmem:[%s549 + $0xec] sm:$0xf] %v1096
        %1161 = vst [vmem:[%s549 + $0xf0] sm:$0xf] %v1097
        %1162 = vst [vmem:[%s549 + $0xf4] sm:$0xf] %v1098
        %1163 = vst [vmem:[%s549 + $0xf8] sm:$0xf] %v1099
        %1164 = vst [vmem:[%s549 + $0xfc] sm:$0xf] %v1100
        %v1165 = vld [vmem:[#allocation10] sm:$0xf]
        %v1166 = vld [vmem:[#allocation10 + $0x4] sm:$0xf]
        %v1167 = vld [vmem:[#allocation10 + $0x8] sm:$0xf]
        %v1168 = vld [vmem:[#allocation10 + $0xc] sm:$0xf]
        %v1169 = vld [vmem:[#allocation10 + $0x10] sm:$0xf]
        %v1170 = vld [vmem:[#allocation10 + $0x14] sm:$0xf]
        %v1171 = vld [vmem:[#allocation10 + $0x18] sm:$0xf]
        %v1172 = vld [vmem:[#allocation10 + $0x1c] sm:$0xf]
        %v1173 = vld [vmem:[#allocation10 + $0x20] sm:$0xf]
        %v1174 = vld [vmem:[#allocation10 + $0x24] sm:$0xf]
        %v1175 = vld [vmem:[#allocation10 + $0x28] sm:$0xf]
        %v1176 = vld [vmem:[#allocation10 + $0x2c] sm:$0xf]
        %v1177 = vld [vmem:[#allocation10 + $0x30] sm:$0xf]
        %v1178 = vld [vmem:[#allocation10 + $0x34] sm:$0xf]
        %v1179 = vld [vmem:[#allocation10 + $0x38] sm:$0xf]
        %v1180 = vld [vmem:[#allocation10 + $0x3c] sm:$0xf]
        %v1181 = vld [vmem:[%s7] sm:$0x1]
        %v1183 = vperm.slane %v1181, 0
        %v1201 = vunpack.c.l.b16 %v1165
        %v1202 = vunpack.c.l.b16 %v1166
        %v1203 = vunpack.c.l.b16 %v1167
        %v1204 = vunpack.c.l.b16 %v1168
        %v1205 = vunpack.c.l.b16 %v1169
        %v1206 = vunpack.c.l.b16 %v1170
        %v1207 = vunpack.c.l.b16 %v1171
        %v1208 = vunpack.c.l.b16 %v1172
        %v1209 = vunpack.c.l.b16 %v1173
        %v1210 = vunpack.c.l.b16 %v1174
        %v1211 = vunpack.c.l.b16 %v1175
        %v1212 = vunpack.c.l.b16 %v1176
        %v1213 = vunpack.c.l.b16 %v1177
        %v1214 = vunpack.c.l.b16 %v1178
        %v1215 = vunpack.c.l.b16 %v1179
        %v1216 = vunpack.c.l.b16 %v1180
        %v1217 = vpack.c.b16 %v1202, %v1201
        %v1218 = vpack.c.b16 %v1204, %v1203
        %v1219 = vpack.c.b16 %v1206, %v1205
        %v1220 = vpack.c.b16 %v1208, %v1207
        %v1221 = vpack.c.b16 %v1210, %v1209
        %v1222 = vpack.c.b16 %v1212, %v1211
        %v1223 = vpack.c.b16 %v1214, %v1213
        %v1224 = vpack.c.b16 %v1216, %v1215
        %1233 = vmatpush.bf16.msra.mxu0 %v1224
        %1234 = vmatpush.bf16.msra.mxu0 %v1223
        %1235 = vmatpush.bf16.msra.mxu0 %v1222
        %1236 = vmatpush.bf16.msra.mxu0 %v1221
        %1237 = vmatpush.bf16.msra.mxu0 %v1220
        %1238 = vmatpush.bf16.msra.mxu0 %v1219
        %1239 = vmatpush.bf16.msra.mxu0 %v1218
        %1240 = vmatpush.bf16.msra.mxu0 %v1217
        %1241 = vmatmul.bf16.gmra.mxu0 %v768
        %v1242 = vpop.f32.mrf.mxu0
        %v1243 = vadd.f32 %v1183, %v1242
        %v1244 = vpop.f32.mrf.mxu0
        %v1245 = vadd.f32 %v1183, %v1244
        %1246 = vmatmul.bf16.gmra.mxu0 %v769
        %v1247 = vpop.f32.mrf.mxu0
        %v1248 = vadd.f32 %v1183, %v1247
        %v1249 = vpop.f32.mrf.mxu0
        %v1250 = vadd.f32 %v1183, %v1249
        %1251 = vmatmul.bf16.gmra.mxu0 %v770
        %v1252 = vpop.f32.mrf.mxu0
        %v1253 = vadd.f32 %v1183, %v1252
        %v1254 = vpop.f32.mrf.mxu0
        %v1255 = vadd.f32 %v1183, %v1254
        %1256 = vmatmul.bf16.gmra.mxu0 %v771
        %v1257 = vpop.f32.mrf.mxu0
        %v1258 = vadd.f32 %v1183, %v1257
        %v1259 = vpop.f32.mrf.mxu0
        %v1260 = vadd.f32 %v1183, %v1259
        %1261 = vmatmul.bf16.gmra.mxu0 %v772
        %v1262 = vpop.f32.mrf.mxu0
        %v1263 = vadd.f32 %v1183, %v1262
        %v1264 = vpop.f32.mrf.mxu0
        %v1265 = vadd.f32 %v1183, %v1264
        %1266 = vmatmul.bf16.gmra.mxu0 %v773
        %v1267 = vpop.f32.mrf.mxu0
        %v1268 = vadd.f32 %v1183, %v1267
        %v1269 = vpop.f32.mrf.mxu0
        %v1270 = vadd.f32 %v1183, %v1269
        %1271 = vmatmul.bf16.gmra.mxu0 %v774
        %v1272 = vpop.f32.mrf.mxu0
        %v1273 = vadd.f32 %v1183, %v1272
        %v1274 = vpop.f32.mrf.mxu0
        %v1275 = vadd.f32 %v1183, %v1274
        %1276 = vmatmul.bf16.gmra.mxu0 %v775
        %v1277 = vpop.f32.mrf.mxu0
        %v1278 = vadd.f32 %v1183, %v1277
        %v1279 = vpop.f32.mrf.mxu0
        %v1280 = vadd.f32 %v1183, %v1279
        %1281 = vmatmul.bf16.gmra.mxu0 %v776
        %v1282 = vpop.f32.mrf.mxu0
        %v1283 = vadd.f32 %v1183, %v1282
        %v1284 = vpop.f32.mrf.mxu0
        %v1285 = vadd.f32 %v1183, %v1284
        %1286 = vmatmul.bf16.gmra.mxu0 %v777
        %v1287 = vpop.f32.mrf.mxu0
        %v1288 = vadd.f32 %v1183, %v1287
        %v1289 = vpop.f32.mrf.mxu0
        %v1290 = vadd.f32 %v1183, %v1289
        %1291 = vmatmul.bf16.gmra.mxu0 %v778
        %v1292 = vpop.f32.mrf.mxu0
        %v1293 = vadd.f32 %v1183, %v1292
        %v1294 = vpop.f32.mrf.mxu0
        %v1295 = vadd.f32 %v1183, %v1294
        %1296 = vmatmul.bf16.gmra.mxu0 %v779
        %v1297 = vpop.f32.mrf.mxu0
        %v1298 = vadd.f32 %v1183, %v1297
        %v1299 = vpop.f32.mrf.mxu0
        %v1300 = vadd.f32 %v1183, %v1299
        %1301 = vmatmul.bf16.gmra.mxu0 %v780
        %v1302 = vpop.f32.mrf.mxu0
        %v1303 = vadd.f32 %v1183, %v1302
        %v1304 = vpop.f32.mrf.mxu0
        %v1305 = vadd.f32 %v1183, %v1304
        %1306 = vmatmul.bf16.gmra.mxu0 %v781
        %v1307 = vpop.f32.mrf.mxu0
        %v1308 = vadd.f32 %v1183, %v1307
        %v1309 = vpop.f32.mrf.mxu0
        %v1310 = vadd.f32 %v1183, %v1309
        %1311 = vmatmul.bf16.gmra.mxu0 %v782
        %v1312 = vpop.f32.mrf.mxu0
        %v1313 = vadd.f32 %v1183, %v1312
        %v1314 = vpop.f32.mrf.mxu0
        %v1315 = vadd.f32 %v1183, %v1314
        %1316 = vmatmul.bf16.gmra.mxu0 %v783
        %v1317 = vpop.f32.mrf.mxu0
        %v1318 = vadd.f32 %v1183, %v1317
        %v1319 = vpop.f32.mrf.mxu0
        %v1320 = vadd.f32 %v1183, %v1319
        %1321 = vmatmul.bf16.gmra.mxu0 %v784
        %v1322 = vpop.f32.mrf.mxu0
        %v1323 = vadd.f32 %v1183, %v1322
        %v1324 = vpop.f32.mrf.mxu0
        %v1325 = vadd.f32 %v1183, %v1324
        %1326 = vmatmul.bf16.gmra.mxu0 %v785
        %v1327 = vpop.f32.mrf.mxu0
        %v1328 = vadd.f32 %v1183, %v1327
        %v1329 = vpop.f32.mrf.mxu0
        %v1330 = vadd.f32 %v1183, %v1329
        %1331 = vmatmul.bf16.gmra.mxu0 %v786
        %v1332 = vpop.f32.mrf.mxu0
        %v1333 = vadd.f32 %v1183, %v1332
        %v1334 = vpop.f32.mrf.mxu0
        %v1335 = vadd.f32 %v1183, %v1334
        %1336 = vmatmul.bf16.gmra.mxu0 %v787
        %v1337 = vpop.f32.mrf.mxu0
        %v1338 = vadd.f32 %v1183, %v1337
        %v1339 = vpop.f32.mrf.mxu0
        %v1340 = vadd.f32 %v1183, %v1339
        %1341 = vmatmul.bf16.gmra.mxu0 %v788
        %v1342 = vpop.f32.mrf.mxu0
        %v1343 = vadd.f32 %v1183, %v1342
        %v1344 = vpop.f32.mrf.mxu0
        %v1345 = vadd.f32 %v1183, %v1344
        %1346 = vmatmul.bf16.gmra.mxu0 %v789
        %v1347 = vpop.f32.mrf.mxu0
        %v1348 = vadd.f32 %v1183, %v1347
        %v1349 = vpop.f32.mrf.mxu0
        %v1350 = vadd.f32 %v1183, %v1349
        %1351 = vmatmul.bf16.gmra.mxu0 %v790
        %v1352 = vpop.f32.mrf.mxu0
        %v1353 = vadd.f32 %v1183, %v1352
        %v1354 = vpop.f32.mrf.mxu0
        %v1355 = vadd.f32 %v1183, %v1354
        %1356 = vmatmul.bf16.gmra.mxu0 %v791
        %v1357 = vpop.f32.mrf.mxu0
        %v1358 = vadd.f32 %v1183, %v1357
        %v1359 = vpop.f32.mrf.mxu0
        %v1360 = vadd.f32 %v1183, %v1359
        %1361 = vmatmul.bf16.gmra.mxu0 %v792
        %v1362 = vpop.f32.mrf.mxu0
        %v1363 = vadd.f32 %v1183, %v1362
        %v1364 = vpop.f32.mrf.mxu0
        %v1365 = vadd.f32 %v1183, %v1364
        %1366 = vmatmul.bf16.gmra.mxu0 %v793
        %v1367 = vpop.f32.mrf.mxu0
        %v1368 = vadd.f32 %v1183, %v1367
        %v1369 = vpop.f32.mrf.mxu0
        %v1370 = vadd.f32 %v1183, %v1369
        %1371 = vmatmul.bf16.gmra.mxu0 %v794
        %v1372 = vpop.f32.mrf.mxu0
        %v1373 = vadd.f32 %v1183, %v1372
        %v1374 = vpop.f32.mrf.mxu0
        %v1375 = vadd.f32 %v1183, %v1374
        %1376 = vmatmul.bf16.gmra.mxu0 %v795
        %v1377 = vpop.f32.mrf.mxu0
        %v1378 = vadd.f32 %v1183, %v1377
        %v1379 = vpop.f32.mrf.mxu0
        %v1380 = vadd.f32 %v1183, %v1379
        %1381 = vmatmul.bf16.gmra.mxu0 %v796
        %v1382 = vpop.f32.mrf.mxu0
        %v1383 = vadd.f32 %v1183, %v1382
        %v1384 = vpop.f32.mrf.mxu0
        %v1385 = vadd.f32 %v1183, %v1384
        %1386 = vmatmul.bf16.gmra.mxu0 %v797
        %v1387 = vpop.f32.mrf.mxu0
        %v1388 = vadd.f32 %v1183, %v1387
        %v1389 = vpop.f32.mrf.mxu0
        %v1390 = vadd.f32 %v1183, %v1389
        %1391 = vmatmul.bf16.gmra.mxu0 %v798
        %v1392 = vpop.f32.mrf.mxu0
        %v1393 = vadd.f32 %v1183, %v1392
        %v1394 = vpop.f32.mrf.mxu0
        %v1395 = vadd.f32 %v1183, %v1394
        %1396 = vmatmul.bf16.gmra.mxu0 %v799
        %v1397 = vpop.f32.mrf.mxu0
        %v1398 = vadd.f32 %v1183, %v1397
        %v1399 = vpop.f32.mrf.mxu0
        %v1400 = vadd.f32 %v1183, %v1399
        %1401 = vdwg.mxu0
        %v1402 = vpack.c.bf16 %v1243, %v1243
        %v1403 = vpack.c.bf16 %v1245, %v1245
        %v1404 = vpack.c.bf16 %v1248, %v1248
        %v1405 = vpack.c.bf16 %v1250, %v1250
        %v1406 = vpack.c.bf16 %v1253, %v1253
        %v1407 = vpack.c.bf16 %v1255, %v1255
        %v1408 = vpack.c.bf16 %v1258, %v1258
        %v1409 = vpack.c.bf16 %v1260, %v1260
        %v1410 = vpack.c.bf16 %v1263, %v1263
        %v1411 = vpack.c.bf16 %v1265, %v1265
        %v1412 = vpack.c.bf16 %v1268, %v1268
        %v1413 = vpack.c.bf16 %v1270, %v1270
        %v1414 = vpack.c.bf16 %v1273, %v1273
        %v1415 = vpack.c.bf16 %v1275, %v1275
        %v1416 = vpack.c.bf16 %v1278, %v1278
        %v1417 = vpack.c.bf16 %v1280, %v1280
        %v1418 = vpack.c.bf16 %v1283, %v1283
        %v1419 = vpack.c.bf16 %v1285, %v1285
        %v1420 = vpack.c.bf16 %v1288, %v1288
        %v1421 = vpack.c.bf16 %v1290, %v1290
        %v1422 = vpack.c.bf16 %v1293, %v1293
        %v1423 = vpack.c.bf16 %v1295, %v1295
        %v1424 = vpack.c.bf16 %v1298, %v1298
        %v1425 = vpack.c.bf16 %v1300, %v1300
        %v1426 = vpack.c.bf16 %v1303, %v1303
        %v1427 = vpack.c.bf16 %v1305, %v1305
        %v1428 = vpack.c.bf16 %v1308, %v1308
        %v1429 = vpack.c.bf16 %v1310, %v1310
        %v1430 = vpack.c.bf16 %v1313, %v1313
        %v1431 = vpack.c.bf16 %v1315, %v1315
        %v1432 = vpack.c.bf16 %v1318, %v1318
        %v1433 = vpack.c.bf16 %v1320, %v1320
        %v1434 = vpack.c.bf16 %v1323, %v1323
        %v1435 = vpack.c.bf16 %v1325, %v1325
        %v1436 = vpack.c.bf16 %v1328, %v1328
        %v1437 = vpack.c.bf16 %v1330, %v1330
        %v1438 = vpack.c.bf16 %v1333, %v1333
        %v1439 = vpack.c.bf16 %v1335, %v1335
        %v1440 = vpack.c.bf16 %v1338, %v1338
        %v1441 = vpack.c.bf16 %v1340, %v1340
        %v1442 = vpack.c.bf16 %v1343, %v1343
        %v1443 = vpack.c.bf16 %v1345, %v1345
        %v1444 = vpack.c.bf16 %v1348, %v1348
        %v1445 = vpack.c.bf16 %v1350, %v1350
        %v1446 = vpack.c.bf16 %v1353, %v1353
        %v1447 = vpack.c.bf16 %v1355, %v1355
        %v1448 = vpack.c.bf16 %v1358, %v1358
        %v1449 = vpack.c.bf16 %v1360, %v1360
        %v1450 = vpack.c.bf16 %v1363, %v1363
        %v1451 = vpack.c.bf16 %v1365, %v1365
        %v1452 = vpack.c.bf16 %v1368, %v1368
        %v1453 = vpack.c.bf16 %v1370, %v1370
        %v1454 = vpack.c.bf16 %v1373, %v1373
        %v1455 = vpack.c.bf16 %v1375, %v1375
        %v1456 = vpack.c.bf16 %v1378, %v1378
        %v1457 = vpack.c.bf16 %v1380, %v1380
        %v1458 = vpack.c.bf16 %v1383, %v1383
        %v1459 = vpack.c.bf16 %v1385, %v1385
        %v1460 = vpack.c.bf16 %v1388, %v1388
        %v1461 = vpack.c.bf16 %v1390, %v1390
        %v1462 = vpack.c.bf16 %v1393, %v1393
        %v1463 = vpack.c.bf16 %v1395, %v1395
        %v1464 = vpack.c.bf16 %v1398, %v1398
        %v1465 = vpack.c.bf16 %v1400, %v1400
        %1466 = vst [vmem:[%s556] sm:$0xf] %v1402
        %1467 = vst [vmem:[%s556 + $0x4] sm:$0xf] %v1403
        %1468 = vst [vmem:[%s556 + $0x8] sm:$0xf] %v1404
        %1469 = vst [vmem:[%s556 + $0xc] sm:$0xf] %v1405
        %1470 = vst [vmem:[%s556 + $0x10] sm:$0xf] %v1406
        %1471 = vst [vmem:[%s556 + $0x14] sm:$0xf] %v1407
        %1472 = vst [vmem:[%s556 + $0x18] sm:$0xf] %v1408
        %1473 = vst [vmem:[%s556 + $0x1c] sm:$0xf] %v1409
        %1474 = vst [vmem:[%s556 + $0x20] sm:$0xf] %v1410
        %1475 = vst [vmem:[%s556 + $0x24] sm:$0xf] %v1411
        %1476 = vst [vmem:[%s556 + $0x28] sm:$0xf] %v1412
        %1477 = vst [vmem:[%s556 + $0x2c] sm:$0xf] %v1413
        %1478 = vst [vmem:[%s556 + $0x30] sm:$0xf] %v1414
        %1479 = vst [vmem:[%s556 + $0x34] sm:$0xf] %v1415
        %1480 = vst [vmem:[%s556 + $0x38] sm:$0xf] %v1416
        %1481 = vst [vmem:[%s556 + $0x3c] sm:$0xf] %v1417
        %1482 = vst [vmem:[%s556 + $0x40] sm:$0xf] %v1418
        %1483 = vst [vmem:[%s556 + $0x44] sm:$0xf] %v1419
        %1484 = vst [vmem:[%s556 + $0x48] sm:$0xf] %v1420
        %1485 = vst [vmem:[%s556 + $0x4c] sm:$0xf] %v1421
        %1486 = vst [vmem:[%s556 + $0x50] sm:$0xf] %v1422
        %1487 = vst [vmem:[%s556 + $0x54] sm:$0xf] %v1423
        %1488 = vst [vmem:[%s556 + $0x58] sm:$0xf] %v1424
        %1489 = vst [vmem:[%s556 + $0x5c] sm:$0xf] %v1425
        %1490 = vst [vmem:[%s556 + $0x60] sm:$0xf] %v1426
        %1491 = vst [vmem:[%s556 + $0x64] sm:$0xf] %v1427
        %1492 = vst [vmem:[%s556 + $0x68] sm:$0xf] %v1428
        %1493 = vst [vmem:[%s556 + $0x6c] sm:$0xf] %v1429
        %1494 = vst [vmem:[%s556 + $0x70] sm:$0xf] %v1430
        %1495 = vst [vmem:[%s556 + $0x74] sm:$0xf] %v1431
        %1496 = vst [vmem:[%s556 + $0x78] sm:$0xf] %v1432
        %1497 = vst [vmem:[%s556 + $0x7c] sm:$0xf] %v1433
        %1498 = vst [vmem:[%s556 + $0x80] sm:$0xf] %v1434
        %1499 = vst [vmem:[%s556 + $0x84] sm:$0xf] %v1435
        %1500 = vst [vmem:[%s556 + $0x88] sm:$0xf] %v1436
        %1501 = vst [vmem:[%s556 + $0x8c] sm:$0xf] %v1437
        %1502 = vst [vmem:[%s556 + $0x90] sm:$0xf] %v1438
        %1503 = vst [vmem:[%s556 + $0x94] sm:$0xf] %v1439
        %1504 = vst [vmem:[%s556 + $0x98] sm:$0xf] %v1440
        %1505 = vst [vmem:[%s556 + $0x9c] sm:$0xf] %v1441
        %1506 = vst [vmem:[%s556 + $0xa0] sm:$0xf] %v1442
        %1507 = vst [vmem:[%s556 + $0xa4] sm:$0xf] %v1443
        %1508 = vst [vmem:[%s556 + $0xa8] sm:$0xf] %v1444
        %1509 = vst [vmem:[%s556 + $0xac] sm:$0xf] %v1445
        %1510 = vst [vmem:[%s556 + $0xb0] sm:$0xf] %v1446
        %1511 = vst [vmem:[%s556 + $0xb4] sm:$0xf] %v1447
        %1512 = vst [vmem:[%s556 + $0xb8] sm:$0xf] %v1448
        %1513 = vst [vmem:[%s556 + $0xbc] sm:$0xf] %v1449
        %1514 = vst [vmem:[%s556 + $0xc0] sm:$0xf] %v1450
        %1515 = vst [vmem:[%s556 + $0xc4] sm:$0xf] %v1451
        %1516 = vst [vmem:[%s556 + $0xc8] sm:$0xf] %v1452
        %1517 = vst [vmem:[%s556 + $0xcc] sm:$0xf] %v1453
        %1518 = vst [vmem:[%s556 + $0xd0] sm:$0xf] %v1454
        %1519 = vst [vmem:[%s556 + $0xd4] sm:$0xf] %v1455
        %1520 = vst [vmem:[%s556 + $0xd8] sm:$0xf] %v1456
        %1521 = vst [vmem:[%s556 + $0xdc] sm:$0xf] %v1457
        %1522 = vst [vmem:[%s556 + $0xe0] sm:$0xf] %v1458
        %1523 = vst [vmem:[%s556 + $0xe4] sm:$0xf] %v1459
        %1524 = vst [vmem:[%s556 + $0xe8] sm:$0xf] %v1460
        %1525 = vst [vmem:[%s556 + $0xec] sm:$0xf] %v1461
        %1526 = vst [vmem:[%s556 + $0xf0] sm:$0xf] %v1462
        %1527 = vst [vmem:[%s556 + $0xf4] sm:$0xf] %v1463
        %1528 = vst [vmem:[%s556 + $0xf8] sm:$0xf] %v1464
        %1529 = vst [vmem:[%s556 + $0xfc] sm:$0xf] %v1465
        %v1530 = vld [vmem:[#allocation11] sm:$0xf]
        %v1531 = vld [vmem:[#allocation11 + $0x4] sm:$0xf]
        %v1532 = vld [vmem:[#allocation11 + $0x8] sm:$0xf]
        %v1533 = vld [vmem:[#allocation11 + $0xc] sm:$0xf]
        %v1534 = vld [vmem:[#allocation11 + $0x10] sm:$0xf]
        %v1535 = vld [vmem:[#allocation11 + $0x14] sm:$0xf]
        %v1536 = vld [vmem:[#allocation11 + $0x18] sm:$0xf]
        %v1537 = vld [vmem:[#allocation11 + $0x1c] sm:$0xf]
        %v1538 = vld [vmem:[#allocation11 + $0x20] sm:$0xf]
        %v1539 = vld [vmem:[#allocation11 + $0x24] sm:$0xf]
        %v1540 = vld [vmem:[#allocation11 + $0x28] sm:$0xf]
        %v1541 = vld [vmem:[#allocation11 + $0x2c] sm:$0xf]
        %v1542 = vld [vmem:[#allocation11 + $0x30] sm:$0xf]
        %v1543 = vld [vmem:[#allocation11 + $0x34] sm:$0xf]
        %v1544 = vld [vmem:[#allocation11 + $0x38] sm:$0xf]
        %v1545 = vld [vmem:[#allocation11 + $0x3c] sm:$0xf]
        %v1546 = vld [vmem:[%s8] sm:$0x1]
        %v1548 = vperm.slane %v1546, 0
        %v1566 = vunpack.c.l.b16 %v1530
        %v1567 = vunpack.c.l.b16 %v1531
        %v1568 = vunpack.c.l.b16 %v1532
        %v1569 = vunpack.c.l.b16 %v1533
        %v1570 = vunpack.c.l.b16 %v1534
        %v1571 = vunpack.c.l.b16 %v1535
        %v1572 = vunpack.c.l.b16 %v1536
        %v1573 = vunpack.c.l.b16 %v1537
        %v1574 = vunpack.c.l.b16 %v1538
        %v1575 = vunpack.c.l.b16 %v1539
        %v1576 = vunpack.c.l.b16 %v1540
        %v1577 = vunpack.c.l.b16 %v1541
        %v1578 = vunpack.c.l.b16 %v1542
        %v1579 = vunpack.c.l.b16 %v1543
        %v1580 = vunpack.c.l.b16 %v1544
        %v1581 = vunpack.c.l.b16 %v1545
        %v1582 = vpack.c.b16 %v1567, %v1566
        %v1583 = vpack.c.b16 %v1569, %v1568
        %v1584 = vpack.c.b16 %v1571, %v1570
        %v1585 = vpack.c.b16 %v1573, %v1572
        %v1586 = vpack.c.b16 %v1575, %v1574
        %v1587 = vpack.c.b16 %v1577, %v1576
        %v1588 = vpack.c.b16 %v1579, %v1578
        %v1589 = vpack.c.b16 %v1581, %v1580
        %1598 = vmatpush.bf16.msra.mxu0 %v1589
        %1599 = vmatpush.bf16.msra.mxu0 %v1588
        %1600 = vmatpush.bf16.msra.mxu0 %v1587
        %1601 = vmatpush.bf16.msra.mxu0 %v1586
        %1602 = vmatpush.bf16.msra.mxu0 %v1585
        %1603 = vmatpush.bf16.msra.mxu0 %v1584
        %1604 = vmatpush.bf16.msra.mxu0 %v1583
        %1605 = vmatpush.bf16.msra.mxu0 %v1582
        %1606 = vmatmul.bf16.gmra.mxu0 %v768
        %v1607 = vpop.f32.mrf.mxu0
        %v1608 = vadd.f32 %v1548, %v1607
        %v1609 = vpop.f32.mrf.mxu0
        %v1610 = vadd.f32 %v1548, %v1609
        %1611 = vmatmul.bf16.gmra.mxu0 %v769
        %v1612 = vpop.f32.mrf.mxu0
        %v1613 = vadd.f32 %v1548, %v1612
        %v1614 = vpop.f32.mrf.mxu0
        %v1615 = vadd.f32 %v1548, %v1614
        %1616 = vmatmul.bf16.gmra.mxu0 %v770
        %v1617 = vpop.f32.mrf.mxu0
        %v1618 = vadd.f32 %v1548, %v1617
        %v1619 = vpop.f32.mrf.mxu0
        %v1620 = vadd.f32 %v1548, %v1619
        %1621 = vmatmul.bf16.gmra.mxu0 %v771
        %v1622 = vpop.f32.mrf.mxu0
        %v1623 = vadd.f32 %v1548, %v1622
        %v1624 = vpop.f32.mrf.mxu0
        %v1625 = vadd.f32 %v1548, %v1624
        %1626 = vmatmul.bf16.gmra.mxu0 %v772
        %v1627 = vpop.f32.mrf.mxu0
        %v1628 = vadd.f32 %v1548, %v1627
        %v1629 = vpop.f32.mrf.mxu0
        %v1630 = vadd.f32 %v1548, %v1629
        %1631 = vmatmul.bf16.gmra.mxu0 %v773
        %v1632 = vpop.f32.mrf.mxu0
        %v1633 = vadd.f32 %v1548, %v1632
        %v1634 = vpop.f32.mrf.mxu0
        %v1635 = vadd.f32 %v1548, %v1634
        %1636 = vmatmul.bf16.gmra.mxu0 %v774
        %v1637 = vpop.f32.mrf.mxu0
        %v1638 = vadd.f32 %v1548, %v1637
        %v1639 = vpop.f32.mrf.mxu0
        %v1640 = vadd.f32 %v1548, %v1639
        %1641 = vmatmul.bf16.gmra.mxu0 %v775
        %v1642 = vpop.f32.mrf.mxu0
        %v1643 = vadd.f32 %v1548, %v1642
        %v1644 = vpop.f32.mrf.mxu0
        %v1645 = vadd.f32 %v1548, %v1644
        %1646 = vmatmul.bf16.gmra.mxu0 %v776
        %v1647 = vpop.f32.mrf.mxu0
        %v1648 = vadd.f32 %v1548, %v1647
        %v1649 = vpop.f32.mrf.mxu0
        %v1650 = vadd.f32 %v1548, %v1649
        %1651 = vmatmul.bf16.gmra.mxu0 %v777
        %v1652 = vpop.f32.mrf.mxu0
        %v1653 = vadd.f32 %v1548, %v1652
        %v1654 = vpop.f32.mrf.mxu0
        %v1655 = vadd.f32 %v1548, %v1654
        %1656 = vmatmul.bf16.gmra.mxu0 %v778
        %v1657 = vpop.f32.mrf.mxu0
        %v1658 = vadd.f32 %v1548, %v1657
        %v1659 = vpop.f32.mrf.mxu0
        %v1660 = vadd.f32 %v1548, %v1659
        %1661 = vmatmul.bf16.gmra.mxu0 %v779
        %v1662 = vpop.f32.mrf.mxu0
        %v1663 = vadd.f32 %v1548, %v1662
        %v1664 = vpop.f32.mrf.mxu0
        %v1665 = vadd.f32 %v1548, %v1664
        %1666 = vmatmul.bf16.gmra.mxu0 %v780
        %v1667 = vpop.f32.mrf.mxu0
        %v1668 = vadd.f32 %v1548, %v1667
        %v1669 = vpop.f32.mrf.mxu0
        %v1670 = vadd.f32 %v1548, %v1669
        %1671 = vmatmul.bf16.gmra.mxu0 %v781
        %v1672 = vpop.f32.mrf.mxu0
        %v1673 = vadd.f32 %v1548, %v1672
        %v1674 = vpop.f32.mrf.mxu0
        %v1675 = vadd.f32 %v1548, %v1674
        %1676 = vmatmul.bf16.gmra.mxu0 %v782
        %v1677 = vpop.f32.mrf.mxu0
        %v1678 = vadd.f32 %v1548, %v1677
        %v1679 = vpop.f32.mrf.mxu0
        %v1680 = vadd.f32 %v1548, %v1679
        %1681 = vmatmul.bf16.gmra.mxu0 %v783
        %v1682 = vpop.f32.mrf.mxu0
        %v1683 = vadd.f32 %v1548, %v1682
        %v1684 = vpop.f32.mrf.mxu0
        %v1685 = vadd.f32 %v1548, %v1684
        %1686 = vmatmul.bf16.gmra.mxu0 %v784
        %v1687 = vpop.f32.mrf.mxu0
        %v1688 = vadd.f32 %v1548, %v1687
        %v1689 = vpop.f32.mrf.mxu0
        %v1690 = vadd.f32 %v1548, %v1689
        %1691 = vmatmul.bf16.gmra.mxu0 %v785
        %v1692 = vpop.f32.mrf.mxu0
        %v1693 = vadd.f32 %v1548, %v1692
        %v1694 = vpop.f32.mrf.mxu0
        %v1695 = vadd.f32 %v1548, %v1694
        %1696 = vmatmul.bf16.gmra.mxu0 %v786
        %v1697 = vpop.f32.mrf.mxu0
        %v1698 = vadd.f32 %v1548, %v1697
        %v1699 = vpop.f32.mrf.mxu0
        %v1700 = vadd.f32 %v1548, %v1699
        %1701 = vmatmul.bf16.gmra.mxu0 %v787
        %v1702 = vpop.f32.mrf.mxu0
        %v1703 = vadd.f32 %v1548, %v1702
        %v1704 = vpop.f32.mrf.mxu0
        %v1705 = vadd.f32 %v1548, %v1704
        %1706 = vmatmul.bf16.gmra.mxu0 %v788
        %v1707 = vpop.f32.mrf.mxu0
        %v1708 = vadd.f32 %v1548, %v1707
        %v1709 = vpop.f32.mrf.mxu0
        %v1710 = vadd.f32 %v1548, %v1709
        %1711 = vmatmul.bf16.gmra.mxu0 %v789
        %v1712 = vpop.f32.mrf.mxu0
        %v1713 = vadd.f32 %v1548, %v1712
        %v1714 = vpop.f32.mrf.mxu0
        %v1715 = vadd.f32 %v1548, %v1714
        %1716 = vmatmul.bf16.gmra.mxu0 %v790
        %v1717 = vpop.f32.mrf.mxu0
        %v1718 = vadd.f32 %v1548, %v1717
        %v1719 = vpop.f32.mrf.mxu0
        %v1720 = vadd.f32 %v1548, %v1719
        %1721 = vmatmul.bf16.gmra.mxu0 %v791
        %v1722 = vpop.f32.mrf.mxu0
        %v1723 = vadd.f32 %v1548, %v1722
        %v1724 = vpop.f32.mrf.mxu0
        %v1725 = vadd.f32 %v1548, %v1724
        %1726 = vmatmul.bf16.gmra.mxu0 %v792
        %v1727 = vpop.f32.mrf.mxu0
        %v1728 = vadd.f32 %v1548, %v1727
        %v1729 = vpop.f32.mrf.mxu0
        %v1730 = vadd.f32 %v1548, %v1729
        %1731 = vmatmul.bf16.gmra.mxu0 %v793
        %v1732 = vpop.f32.mrf.mxu0
        %v1733 = vadd.f32 %v1548, %v1732
        %v1734 = vpop.f32.mrf.mxu0
        %v1735 = vadd.f32 %v1548, %v1734
        %1736 = vmatmul.bf16.gmra.mxu0 %v794
        %v1737 = vpop.f32.mrf.mxu0
        %v1738 = vadd.f32 %v1548, %v1737
        %v1739 = vpop.f32.mrf.mxu0
        %v1740 = vadd.f32 %v1548, %v1739
        %1741 = vmatmul.bf16.gmra.mxu0 %v795
        %v1742 = vpop.f32.mrf.mxu0
        %v1743 = vadd.f32 %v1548, %v1742
        %v1744 = vpop.f32.mrf.mxu0
        %v1745 = vadd.f32 %v1548, %v1744
        %1746 = vmatmul.bf16.gmra.mxu0 %v796
        %v1747 = vpop.f32.mrf.mxu0
        %v1748 = vadd.f32 %v1548, %v1747
        %v1749 = vpop.f32.mrf.mxu0
        %v1750 = vadd.f32 %v1548, %v1749
        %1751 = vmatmul.bf16.gmra.mxu0 %v797
        %v1752 = vpop.f32.mrf.mxu0
        %v1753 = vadd.f32 %v1548, %v1752
        %v1754 = vpop.f32.mrf.mxu0
        %v1755 = vadd.f32 %v1548, %v1754
        %1756 = vmatmul.bf16.gmra.mxu0 %v798
        %v1757 = vpop.f32.mrf.mxu0
        %v1758 = vadd.f32 %v1548, %v1757
        %v1759 = vpop.f32.mrf.mxu0
        %v1760 = vadd.f32 %v1548, %v1759
        %1761 = vmatmul.bf16.gmra.mxu0 %v799
        %v1762 = vpop.f32.mrf.mxu0
        %v1763 = vadd.f32 %v1548, %v1762
        %v1764 = vpop.f32.mrf.mxu0
        %v1765 = vadd.f32 %v1548, %v1764
        %1766 = vdwg.mxu0
        %v1767 = vpack.c.bf16 %v1608, %v1608
        %v1768 = vpack.c.bf16 %v1610, %v1610
        %v1769 = vpack.c.bf16 %v1613, %v1613
        %v1770 = vpack.c.bf16 %v1615, %v1615
        %v1771 = vpack.c.bf16 %v1618, %v1618
        %v1772 = vpack.c.bf16 %v1620, %v1620
        %v1773 = vpack.c.bf16 %v1623, %v1623
        %v1774 = vpack.c.bf16 %v1625, %v1625
        %v1775 = vpack.c.bf16 %v1628, %v1628
        %v1776 = vpack.c.bf16 %v1630, %v1630
        %v1777 = vpack.c.bf16 %v1633, %v1633
        %v1778 = vpack.c.bf16 %v1635, %v1635
        %v1779 = vpack.c.bf16 %v1638, %v1638
        %v1780 = vpack.c.bf16 %v1640, %v1640
        %v1781 = vpack.c.bf16 %v1643, %v1643
        %v1782 = vpack.c.bf16 %v1645, %v1645
        %v1783 = vpack.c.bf16 %v1648, %v1648
        %v1784 = vpack.c.bf16 %v1650, %v1650
        %v1785 = vpack.c.bf16 %v1653, %v1653
        %v1786 = vpack.c.bf16 %v1655, %v1655
        %v1787 = vpack.c.bf16 %v1658, %v1658
        %v1788 = vpack.c.bf16 %v1660, %v1660
        %v1789 = vpack.c.bf16 %v1663, %v1663
        %v1790 = vpack.c.bf16 %v1665, %v1665
        %v1791 = vpack.c.bf16 %v1668, %v1668
        %v1792 = vpack.c.bf16 %v1670, %v1670
        %v1793 = vpack.c.bf16 %v1673, %v1673
        %v1794 = vpack.c.bf16 %v1675, %v1675
        %v1795 = vpack.c.bf16 %v1678, %v1678
        %v1796 = vpack.c.bf16 %v1680, %v1680
        %v1797 = vpack.c.bf16 %v1683, %v1683
        %v1798 = vpack.c.bf16 %v1685, %v1685
        %v1799 = vpack.c.bf16 %v1688, %v1688
        %v1800 = vpack.c.bf16 %v1690, %v1690
        %v1801 = vpack.c.bf16 %v1693, %v1693
        %v1802 = vpack.c.bf16 %v1695, %v1695
        %v1803 = vpack.c.bf16 %v1698, %v1698
        %v1804 = vpack.c.bf16 %v1700, %v1700
        %v1805 = vpack.c.bf16 %v1703, %v1703
        %v1806 = vpack.c.bf16 %v1705, %v1705
        %v1807 = vpack.c.bf16 %v1708, %v1708
        %v1808 = vpack.c.bf16 %v1710, %v1710
        %v1809 = vpack.c.bf16 %v1713, %v1713
        %v1810 = vpack.c.bf16 %v1715, %v1715
        %v1811 = vpack.c.bf16 %v1718, %v1718
        %v1812 = vpack.c.bf16 %v1720, %v1720
        %v1813 = vpack.c.bf16 %v1723, %v1723
        %v1814 = vpack.c.bf16 %v1725, %v1725
        %v1815 = vpack.c.bf16 %v1728, %v1728
        %v1816 = vpack.c.bf16 %v1730, %v1730
        %v1817 = vpack.c.bf16 %v1733, %v1733
        %v1818 = vpack.c.bf16 %v1735, %v1735
        %v1819 = vpack.c.bf16 %v1738, %v1738
        %v1820 = vpack.c.bf16 %v1740, %v1740
        %v1821 = vpack.c.bf16 %v1743, %v1743
        %v1822 = vpack.c.bf16 %v1745, %v1745
        %v1823 = vpack.c.bf16 %v1748, %v1748
        %v1824 = vpack.c.bf16 %v1750, %v1750
        %v1825 = vpack.c.bf16 %v1753, %v1753
        %v1826 = vpack.c.bf16 %v1755, %v1755
        %v1827 = vpack.c.bf16 %v1758, %v1758
        %v1828 = vpack.c.bf16 %v1760, %v1760
        %v1829 = vpack.c.bf16 %v1763, %v1763
        %v1830 = vpack.c.bf16 %v1765, %v1765
        %1831 = vst [vmem:[%s563] sm:$0xf] %v1767
        %1832 = vst [vmem:[%s563 + $0x4] sm:$0xf] %v1768
        %1833 = vst [vmem:[%s563 + $0x8] sm:$0xf] %v1769
        %1834 = vst [vmem:[%s563 + $0xc] sm:$0xf] %v1770
        %1835 = vst [vmem:[%s563 + $0x10] sm:$0xf] %v1771
        %1836 = vst [vmem:[%s563 + $0x14] sm:$0xf] %v1772
        %1837 = vst [vmem:[%s563 + $0x18] sm:$0xf] %v1773
        %1838 = vst [vmem:[%s563 + $0x1c] sm:$0xf] %v1774
        %1839 = vst [vmem:[%s563 + $0x20] sm:$0xf] %v1775
        %1840 = vst [vmem:[%s563 + $0x24] sm:$0xf] %v1776
        %1841 = vst [vmem:[%s563 + $0x28] sm:$0xf] %v1777
        %1842 = vst [vmem:[%s563 + $0x2c] sm:$0xf] %v1778
        %1843 = vst [vmem:[%s563 + $0x30] sm:$0xf] %v1779
        %1844 = vst [vmem:[%s563 + $0x34] sm:$0xf] %v1780
        %1845 = vst [vmem:[%s563 + $0x38] sm:$0xf] %v1781
        %1846 = vst [vmem:[%s563 + $0x3c] sm:$0xf] %v1782
        %1847 = vst [vmem:[%s563 + $0x40] sm:$0xf] %v1783
        %1848 = vst [vmem:[%s563 + $0x44] sm:$0xf] %v1784
        %1849 = vst [vmem:[%s563 + $0x48] sm:$0xf] %v1785
        %1850 = vst [vmem:[%s563 + $0x4c] sm:$0xf] %v1786
        %1851 = vst [vmem:[%s563 + $0x50] sm:$0xf] %v1787
        %1852 = vst [vmem:[%s563 + $0x54] sm:$0xf] %v1788
        %1853 = vst [vmem:[%s563 + $0x58] sm:$0xf] %v1789
        %1854 = vst [vmem:[%s563 + $0x5c] sm:$0xf] %v1790
        %1855 = vst [vmem:[%s563 + $0x60] sm:$0xf] %v1791
        %1856 = vst [vmem:[%s563 + $0x64] sm:$0xf] %v1792
        %1857 = vst [vmem:[%s563 + $0x68] sm:$0xf] %v1793
        %1858 = vst [vmem:[%s563 + $0x6c] sm:$0xf] %v1794
        %1859 = vst [vmem:[%s563 + $0x70] sm:$0xf] %v1795
        %1860 = vst [vmem:[%s563 + $0x74] sm:$0xf] %v1796
        %1861 = vst [vmem:[%s563 + $0x78] sm:$0xf] %v1797
        %1862 = vst [vmem:[%s563 + $0x7c] sm:$0xf] %v1798
        %1863 = vst [vmem:[%s563 + $0x80] sm:$0xf] %v1799
        %1864 = vst [vmem:[%s563 + $0x84] sm:$0xf] %v1800
        %1865 = vst [vmem:[%s563 + $0x88] sm:$0xf] %v1801
        %1866 = vst [vmem:[%s563 + $0x8c] sm:$0xf] %v1802
        %1867 = vst [vmem:[%s563 + $0x90] sm:$0xf] %v1803
        %1868 = vst [vmem:[%s563 + $0x94] sm:$0xf] %v1804
        %1869 = vst [vmem:[%s563 + $0x98] sm:$0xf] %v1805
        %1870 = vst [vmem:[%s563 + $0x9c] sm:$0xf] %v1806
        %1871 = vst [vmem:[%s563 + $0xa0] sm:$0xf] %v1807
        %1872 = vst [vmem:[%s563 + $0xa4] sm:$0xf] %v1808
        %1873 = vst [vmem:[%s563 + $0xa8] sm:$0xf] %v1809
        %1874 = vst [vmem:[%s563 + $0xac] sm:$0xf] %v1810
        %1875 = vst [vmem:[%s563 + $0xb0] sm:$0xf] %v1811
        %1876 = vst [vmem:[%s563 + $0xb4] sm:$0xf] %v1812
        %1877 = vst [vmem:[%s563 + $0xb8] sm:$0xf] %v1813
        %1878 = vst [vmem:[%s563 + $0xbc] sm:$0xf] %v1814
        %1879 = vst [vmem:[%s563 + $0xc0] sm:$0xf] %v1815
        %1880 = vst [vmem:[%s563 + $0xc4] sm:$0xf] %v1816
        %1881 = vst [vmem:[%s563 + $0xc8] sm:$0xf] %v1817
        %1882 = vst [vmem:[%s563 + $0xcc] sm:$0xf] %v1818
        %1883 = vst [vmem:[%s563 + $0xd0] sm:$0xf] %v1819
        %1884 = vst [vmem:[%s563 + $0xd4] sm:$0xf] %v1820
        %1885 = vst [vmem:[%s563 + $0xd8] sm:$0xf] %v1821
        %1886 = vst [vmem:[%s563 + $0xdc] sm:$0xf] %v1822
        %1887 = vst [vmem:[%s563 + $0xe0] sm:$0xf] %v1823
        %1888 = vst [vmem:[%s563 + $0xe4] sm:$0xf] %v1824
        %1889 = vst [vmem:[%s563 + $0xe8] sm:$0xf] %v1825
        %1890 = vst [vmem:[%s563 + $0xec] sm:$0xf] %v1826
        %1891 = vst [vmem:[%s563 + $0xf0] sm:$0xf] %v1827
        %1892 = vst [vmem:[%s563 + $0xf4] sm:$0xf] %v1828
        %1893 = vst [vmem:[%s563 + $0xf8] sm:$0xf] %v1829
        %1894 = vst [vmem:[%s563 + $0xfc] sm:$0xf] %v1830
        %s1895 = sand.u32 %s265, 1
        %s1896 = scalar_lea.sflag [#allocation4], %s1895
        %s1897 = sand.u32 %s265, 1
        %s1898 = smul.addr %s1897, 256
        %s1899 = scalar_lea.vmem [#allocation13], %s1898
        %s1900 = sand.u32 %s37, 1
        %s1901 = scalar_lea.sflag [#allocation15], %s1900
        %s1902 = sand.u32 %s293, 1
        %s1903 = smul.addr %s1902, 256
        %s1904 = scalar_lea.vmem [#allocation14], %s1903
        %s1905 = sand.u32 %s37, 1
        %s1906 = scalar_lea.sflag [#allocation15], %s1905
        %s1907 = sand.u32 %s321, 1
        %s1908 = smul.addr %s1907, 256
        %s1909 = scalar_lea.vmem [#allocation16], %s1908
        // Predicated region
        $region81: #{tpu_custom_call.1} parent=55 // pred_check
          %p1910 = pneg %p275
        $region82: #{tpu_custom_call.1} parent=55 // pred_check_branch
          %1912 = sbr.rel (%p1910) target = $region84
        $region83: #{tpu_custom_call.1} parent=55 // pred_region
          %s1913 = smul.u32 64, %s42
          %1915 = vsyncadd %s1896, 0
          %s1916 = smul.addr %s41, 128
          %s1917 = sadd.s32 %s1913, %s1916
          %s1918 = smul.addr %s1917, 4
          %s1919 = scalar_lea.hbm %s9, %s1918
          %s1920 = sshll.u32 %s1899, 4
          %s1921 = int_to_ptr.vmem [resolvable:$true] %s1920
          %s1922 = sshll.u32 %s1919, 4
          %s1923 = int_to_ptr.hbm [resolvable:$true] %s1922
          %1928 = dma.vmem_to_hbm [thread:$0]  %s1921, 4096, %s1923, %s1896, 64, 64, 4
        $region84: #{tpu_custom_call.1} parent=55 // pred_fallthru
          _
        // Predicated region
        $region85: #{tpu_custom_call.1} parent=55 // pred_check
          %p1929 = pneg %p303
        $region86: #{tpu_custom_call.1} parent=55 // pred_check_branch
          %1931 = sbr.rel (%p1929) target = $region88
        $region87: #{tpu_custom_call.1} parent=55 // pred_region
          %s1932 = smul.u32 64, %s42
          %1934 = vsyncadd %s1901, 0
          %s1935 = smul.addr %s41, 128
          %s1936 = sadd.s32 %s1932, %s1935
          %s1937 = smul.addr %s1936, 4
          %s1938 = scalar_lea.hbm %s10, %s1937
          %s1939 = sshll.u32 %s1904, 4
          %s1940 = int_to_ptr.vmem [resolvable:$true] %s1939
          %s1941 = sshll.u32 %s1938, 4
          %s1942 = int_to_ptr.hbm [resolvable:$true] %s1941
          %1947 = dma.vmem_to_hbm [thread:$0]  %s1940, 4096, %s1942, %s1901, 64, 64, 4
        $region88: #{tpu_custom_call.1} parent=55 // pred_fallthru
          _
        // Predicated region
        $region89: #{tpu_custom_call.1} parent=55 // pred_check
          %p1948 = pneg %p331
        $region90: #{tpu_custom_call.1} parent=55 // pred_check_branch
          %1950 = sbr.rel (%p1948) target = $region92
        $region91: #{tpu_custom_call.1} parent=55 // pred_region
          %s1951 = smul.u32 64, %s42
          %1953 = vsyncadd %s1906, 0
          %s1954 = smul.addr %s41, 128
          %s1955 = sadd.s32 %s1951, %s1954
          %s1956 = smul.addr %s1955, 4
          %s1957 = scalar_lea.hbm %s11, %s1956
          %s1958 = sshll.u32 %s1909, 4
          %s1959 = int_to_ptr.vmem [resolvable:$true] %s1958
          %s1960 = sshll.u32 %s1957, 4
          %s1961 = int_to_ptr.hbm [resolvable:$true] %s1960
          %1966 = dma.vmem_to_hbm [thread:$0]  %s1959, 4096, %s1961, %s1906, 64, 64, 4
        $region92: #{tpu_custom_call.1} parent=55 // pred_fallthru
          _
      $region56: #{tpu_custom_call.1} parent=5 // pred_fallthru
        _
      %p1967 = scmp.le.s32.totalorder 2, %s32
      // Predicated region
      $region93: #{tpu_custom_call.1} parent=5 // pred_check
        %p1968 = pneg %p1967
      $region94: #{tpu_custom_call.1} parent=5 // pred_check_branch
        %1970 = sbr.rel (%p1968) target = $region96
      $region95: #{tpu_custom_call.1} parent=5 // pred_region
        %s1971 = ssub.s32 %s32, 2
        // Predicated region
        $region97: #{tpu_custom_call.1} parent=95 // pred_check
          %p1972 = pneg %p281
        $region98: #{tpu_custom_call.1} parent=95 // pred_check_branch
          %1974 = sbr.rel (%p1972) target = $region100
        $region99: #{tpu_custom_call.1} parent=95 // pred_region
          %s1975 = sand.u32 %s266, 1
          %s1976 = scalar_lea.sflag [#allocation4], %s1975
          %s1977 = sand.u32 %s266, 1
          %s1978 = smul.addr %s1977, 256
          %s1979 = scalar_lea.vmem [#allocation13], %s1978
          %1981 = dma.done %s1976, 4096
        $region100: #{tpu_custom_call.1} parent=95 // pred_fallthru
          _
        // Predicated region
        $region101: #{tpu_custom_call.1} parent=95 // pred_check
          %p1982 = pneg %p309
        $region102: #{tpu_custom_call.1} parent=95 // pred_check_branch
          %1984 = sbr.rel (%p1982) target = $region104
        $region103: #{tpu_custom_call.1} parent=95 // pred_region
          %s1985 = sand.u32 %s38, 1
          %s1986 = scalar_lea.sflag [#allocation15], %s1985
          %s1987 = sand.u32 %s294, 1
          %s1988 = smul.addr %s1987, 256
          %s1989 = scalar_lea.vmem [#allocation14], %s1988
          %1991 = dma.done %s1986, 4096
        $region104: #{tpu_custom_call.1} parent=95 // pred_fallthru
          _
        // Predicated region
        $region105: #{tpu_custom_call.1} parent=95 // pred_check
          %p1992 = pneg %p337
        $region106: #{tpu_custom_call.1} parent=95 // pred_check_branch
          %1994 = sbr.rel (%p1992) target = $region108
        $region107: #{tpu_custom_call.1} parent=95 // pred_region
          %s1995 = sand.u32 %s38, 1
          %s1996 = scalar_lea.sflag [#allocation15], %s1995
          %s1997 = sand.u32 %s322, 1
          %s1998 = smul.addr %s1997, 256
          %s1999 = scalar_lea.vmem [#allocation16], %s1998
          %2001 = dma.done %s1996, 4096
        $region108: #{tpu_custom_call.1} parent=95 // pred_fallthru
          _
      $region96: #{tpu_custom_call.1} parent=5 // pred_fallthru
        _
    $region6: #{tpu_custom_call.1} parent=1 // loop_footer
      %s36 = sadd.s32 1, %s32
    $region7: #{tpu_custom_call.1} parent=1 // loop_footer_branch
      %31 = sbr.rel target = $region3
    $region8: #{tpu_custom_call.1} parent=1 // loop_exit
      _
    %2002 = vsyncpa [#allocation3], 1
    %s2003 = scalar_lea.sflag [#allocation3], 1
    %2004 = vsyncpa %s2003, 1
    %2005 = vsyncpa [#allocation6], 1
    %s2006 = scalar_lea.sflag [#allocation6], 1
    %2007 = vsyncpa %s2006, 1
    %2008 = vsyncpa [#allocation9], 1
    %2009 = vsyncpa [#allocation12], 1
    %2010 = vsyncpa [#allocation4], 1
    %s2011 = scalar_lea.sflag [#allocation4], 1
    %2012 = vsyncpa %s2011, 1
    %2013 = vsyncpa [#allocation15], 1
    %s2014 = scalar_lea.sflag [#allocation15], 1
    %2015 = vsyncpa %s2014, 1

</llo_original>
